<compile_context>
chip_gen: v6e
topology: v6e:2x2x1
jax: 0.10.0
libtpu: 0.0.40
codegen_flags: <defaults>
</compile_context>

<pallas_src>
import jax
import jax.numpy as jnp
from jax.experimental import pallas as pl
from jax.experimental.pallas import tpu as pltpu


def _prelu(x, a):
    return jnp.where(x >= 0, x, a * x)


def _round_up(a, b):
    return (a + b - 1) // b * b


def _tile_bytes(shape, dtype):
    """VMEM footprint of a tile including sublane/lane padding."""
    it = jnp.dtype(dtype).itemsize
    sub = 8 * (4 // it)
    if len(shape) == 1:
        lead, r, l = 1, 1, int(shape[0])
    else:
        lead = 1
        for s in shape[:-2]:
            lead *= int(s)
        r, l = int(shape[-2]), int(shape[-1])
    return lead * _round_up(max(r, 1), sub) * _round_up(max(l, 1), 128) * it


def nnconv_prelu_kernel(attr_ref, src_ref, dst_ref, x_ref, invdeg_ref,
                        w1_ref, b1_ref, w2_ref, b2_ref, w3_ref, b3_ref,
                        wbig_ref, b4_ref, root_ref, bias_ref, prelu_ref,
                        out_ref):
    k = pl.program_id(0)

    @pl.when(k == 0)
    def _():
        out_ref[...] = jnp.zeros_like(out_ref)

    a1 = prelu_ref[0]
    a2 = prelu_ref[1]
    a3 = prelu_ref[2]
    a_out = prelu_ref[3]

    cdt = x_ref.dtype                       # compute dtype for MXU operands
    C, n_nodes = x_ref.shape
    tile_e = attr_ref.shape[1]

    # ---- edge-conditioned MLP, transposed (edges on lanes): h is [K, tile_e] ----
    h = attr_ref[...]
    h = _prelu(jnp.dot(w1_ref[...], h, preferred_element_type=jnp.float32)
               + b1_ref[...], a1).astype(cdt)
    h = _prelu(jnp.dot(w2_ref[...], h, preferred_element_type=jnp.float32)
               + b2_ref[...], a2).astype(cdt)
    h = _prelu(jnp.dot(w3_ref[...], h, preferred_element_type=jnp.float32)
               + b3_ref[...], a3).astype(cdt)                                   # [K, tE]

    # ---- one-hot gather on the MXU: x_src[c, e] = x[src[e], c] ----
    iota_src = jax.lax.broadcasted_iota(jnp.int32, (n_nodes, tile_e), 0)        # [N, tE]
    gather = (iota_src == src_ref[...]).astype(cdt)                             # [N, tE]
    x_src = jnp.dot(x_ref[...], gather,
                    preferred_element_type=jnp.float32).astype(cdt)             # [C, tE]

    # ---- fused bilinear message: one 128-deep lane-dense contraction ----
    #   H_big[i*K + j, e] = x_src[i, e] * h[j, e]
    h_big = jnp.concatenate([x_src[i:i + 1, :] * h for i in range(C)], axis=0)  # [C*K, tE]
    msg = (jnp.dot(wbig_ref[...], h_big, preferred_element_type=jnp.float32)
           + jnp.dot(b4_ref[...], x_src, preferred_element_type=jnp.float32))   # [C, tE] f32

    # ---- 0/1 scatter to destination nodes (padded edges carry dst = N -> no hit) ----
    iota_dst = jax.lax.broadcasted_iota(jnp.int32, (tile_e, n_nodes), 1)        # [tE, N]
    scat = (iota_dst == dst_ref[...]).astype(jnp.float32)                       # [tE, N]
    out_ref[...] += jnp.dot(msg, scat, preferred_element_type=jnp.float32)      # [C, N] f32

    @pl.when(k == pl.num_programs(0) - 1)
    def _():
        aggr = out_ref[...] * invdeg_ref[...]                 # node-side mean (f32)
        res = (aggr
               + jnp.dot(root_ref[...], x_ref[...], preferred_element_type=jnp.float32)
               + bias_ref[...])
        out_ref[...] = _prelu(res, a_out)


def onestep_kernel_forward(x, src, dst, edge_attr, params, *,
                           compute_dtype=jnp.float32, tile_e=512):
    """x:[N,C] f32, src/dst:[E] int32, edge_attr:[E,F] f32. Returns [N,C] f32."""
    N, C = x.shape
    E, F = edge_attr.shape
    K = params["w1"].shape[1]
    f32 = jnp.float32
    cdt = compute_dtype

    # --- edge-axis tiling: lane-dense multiples of 128; pad ragged E ---
    if E <= tile_e:
        tile_e = max(_round_up(E, 128), 128)
        e_pad = tile_e
    else:
        tile_e = _round_up(tile_e, 128)
        e_pad = _round_up(E, tile_e)
    pad = e_pad - E

    # node-side mean normalization (resident f32 row; deg==0 nodes -> 0)
    deg = jax.ops.segment_sum(jnp.ones((E,), f32), dst, num_segments=N)
    inv_deg = jnp.where(deg > 0, 1.0 / jnp.maximum(deg, 1.0), 0.0).reshape(1, N)

    # transposed / padded edge streams; padded dst gets sentinel N (never matches)
    attr_t = jnp.pad(edge_attr, ((0, pad), (0, 0))).T.astype(cdt)            # [F, e_pad]
    src_p = jnp.pad(src.astype(jnp.int32), (0, pad)).reshape(1, e_pad)       # [1, e_pad]
    dst_p = jnp.pad(dst.astype(jnp.int32), (0, pad),
                    constant_values=N).reshape(e_pad, 1)                     # [e_pad, 1]

    # transposed weights; biases / slopes stay f32 (elementwise path stays f32)
    w1t = params["w1"].T.astype(cdt)                                         # [K, F]
    w2t = params["w2"].T.astype(cdt)                                         # [K, K]
    w3t = params["w3"].T.astype(cdt)                                         # [K, K]
    b1c = params["b1"].reshape(K, 1).astype(f32)
    b2c = params["b2"].reshape(K, 1).astype(f32)
    b3c = params["b3"].reshape(K, 1).astype(f32)
    # W_big[o, i*K + k] = w4[k, i*C + o] ; b4t[o, i] = b4[i*C + o]
    w_big = jnp.transpose(params["w4"].reshape(K, C, C), (2, 1, 0)).reshape(C, C * K).astype(cdt)
    b4t = params["b4"].reshape(C, C).T.astype(cdt)
    root_t = params["root"].T.astype(cdt)                                    # [C, C]
    bias_c = params["bias"].reshape(C, 1).astype(f32)
    prelu = params["prelu"].astype(f32)
    x_t = x.T.astype(cdt)                                                    # [C, N]

    grid = (e_pad // tile_e,)

    # --- VMEM budget with lane padding accounted for; capped for v7x (64 MiB/TC) ---
    stream_bytes = 2 * (_tile_bytes((F, tile_e), cdt)
                        + _tile_bytes((1, tile_e), jnp.int32)
                        + _tile_bytes((tile_e, 1), jnp.int32))
    resident_bytes = (2 * _tile_bytes((C, N), f32)                # out
                      + _tile_bytes((C, N), cdt)                  # x
                      + _tile_bytes((1, N), f32)                  # inv_deg
                      + _tile_bytes((K, F), cdt)
                      + 2 * _tile_bytes((K, K), cdt)
                      + 3 * _tile_bytes((K, 1), f32)
                      + _tile_bytes((C, C * K), cdt)
                      + 2 * _tile_bytes((C, C), cdt)
                      + _tile_bytes((C, 1), f32))
    scratch_bytes = (_tile_bytes((C * K, tile_e), cdt)            # H_big
                     + 3 * _tile_bytes((K, tile_e), f32)          # MLP activations
                     + _tile_bytes((N, tile_e), cdt)              # gather one-hot
                     + _tile_bytes((tile_e, N), f32)              # scatter one-hot
                     + 2 * _tile_bytes((C, tile_e), f32))         # x_src / msg
    vmem_limit = int(min(max(2 * (stream_bytes + resident_bytes + scratch_bytes),
                             32 << 20), 40 << 20))

    out_t = pl.pallas_call(
        nnconv_prelu_kernel,
        out_shape=jax.ShapeDtypeStruct((C, N), f32),
        grid_spec=pltpu.PrefetchScalarGridSpec(
            num_scalar_prefetch=0,
            grid=grid,
            in_specs=[
                pl.BlockSpec((F, tile_e), lambda k: (0, k)),      # edge_attr^T (streamed)
                pl.BlockSpec((1, tile_e), lambda k: (0, k)),      # src indices (streamed)
                pl.BlockSpec((tile_e, 1), lambda k: (k, 0)),      # dst indices (streamed)
                pl.BlockSpec((C, N), lambda k: (0, 0)),           # x^T         (resident)
                pl.BlockSpec((1, N), lambda k: (0, 0)),           # 1/deg       (resident)
                pl.BlockSpec((K, F), lambda k: (0, 0)),           # w1^T
                pl.BlockSpec((K, 1), lambda k: (0, 0)),           # b1
                pl.BlockSpec((K, K), lambda k: (0, 0)),           # w2^T
                pl.BlockSpec((K, 1), lambda k: (0, 0)),           # b2
                pl.BlockSpec((K, K), lambda k: (0, 0)),           # w3^T
                pl.BlockSpec((K, 1), lambda k: (0, 0)),           # b3
                pl.BlockSpec((C, C * K), lambda k: (0, 0)),       # fused bilinear weight
                pl.BlockSpec((C, C), lambda k: (0, 0)),           # fused bilinear bias
                pl.BlockSpec((C, C), lambda k: (0, 0)),           # root^T
                pl.BlockSpec((C, 1), lambda k: (0, 0)),           # conv bias
                pl.BlockSpec(memory_space=pltpu.SMEM),            # prelu slopes [4]
            ],
            out_specs=pl.BlockSpec((C, N), lambda k: (0, 0)),
        ),
        compiler_params=pltpu.CompilerParams(
            dimension_semantics=("arbitrary",),
            vmem_limit_bytes=vmem_limit),
    )(attr_t, src_p, dst_p, x_t, inv_deg,
      w1t, b1c, w2t, b2c, w3t, b3c, w_big, b4t, root_t, bias_c, prelu)

    return out_t.T  # [N, C]


def ref_forward(x, src, dst, edge_attr, params, N, C):
    """Pure-JAX f32 reference of NNConv(aggr='mean') + PReLU (high precision)."""
    hp = jax.lax.Precision.HIGHEST
    a1, a2, a3, a_out = [params["prelu"][i] for i in range(4)]
    h = _prelu(jnp.dot(edge_attr, params["w1"], precision=hp) + params["b1"], a1)
    h = _prelu(jnp.dot(h, params["w2"], precision=hp) + params["b2"], a2)
    h = _prelu(jnp.dot(h, params["w3"], precision=hp) + params["b3"], a3)
    wm = (jnp.dot(h, params["w4"], precision=hp) + params["b4"]).reshape(-1, C, C)
    x_j = x[src]
    msg = jnp.einsum("ec,eco->eo", x_j, wm, precision=hp)
    summ = jax.ops.segment_sum(msg, dst, num_segments=N)
    deg = jax.ops.segment_sum(jnp.ones_like(dst, dtype=jnp.float32), dst, num_segments=N)
    aggr = summ / jnp.maximum(deg, 1.0)[:, None]
    out = aggr + jnp.dot(x, params["root"], precision=hp) + params["bias"]
    return _prelu(out, a_out)


if __name__ == "__main__":
    # Small shapes consistent with the module: transchannel=4, ker_width=32, edgefeasize=6.
    N, E, C, F, K = 16, 64, 4, 6, 32
    key = jax.random.PRNGKey(0)
    keys = jax.random.split(key, 14)

    x = jax.random.normal(keys[0], (N, C), dtype=jnp.float32)
    edge_attr = jax.random.normal(keys[1], (E, F), dtype=jnp.float32)
    src = jax.random.randint(keys[2], (E,), 0, N, dtype=jnp.int32)
    dst = jax.random.randint(keys[3], (E,), 0, N, dtype=jnp.int32)

    params = {
        "w1": 0.1 * jax.random.normal(keys[4], (F, K), dtype=jnp.float32),
        "b1": 0.1 * jax.random.normal(keys[5], (1, K), dtype=jnp.float32),
        "w2": 0.1 * jax.random.normal(keys[6], (K, K), dtype=jnp.float32),
        "b2": 0.1 * jax.random.normal(keys[7], (1, K), dtype=jnp.float32),
        "w3": 0.1 * jax.random.normal(keys[8], (K, K), dtype=jnp.float32),
        "b3": 0.1 * jax.random.normal(keys[9], (1, K), dtype=jnp.float32),
        "w4": 0.1 * jax.random.normal(keys[10], (K, C * C), dtype=jnp.float32),
        "b4": 0.05 * jax.random.normal(keys[11], (1, C * C), dtype=jnp.float32),
        "root": 0.1 * jax.random.normal(keys[12], (C, C), dtype=jnp.float32),
        "bias": jnp.zeros((1, C), dtype=jnp.float32),
        # PyTorch PReLU default init: a = 0.25 (3 MLP PReLUs + final nonlinearr)
        "prelu": jnp.full((4,), 0.25, dtype=jnp.float32),
    }

    ref = ref_forward(x, src, dst, edge_attr, params, N, C)

    # f32 compute path (single edge tile).
    out_f32 = jax.block_until_ready(
        onestep_kernel_forward(x, src, dst, edge_attr, params,
                               compute_dtype=jnp.float32))
    assert out_f32.shape == (N, C)
    assert jnp.allclose(out_f32, ref, atol=1e-3, rtol=1e-3), (
        f"f32 path: max abs diff {jnp.max(jnp.abs(out_f32 - ref))}")

    # bf16 MXU-operand path (v6e/v7x); scatter / mean / accumulation stay f32.
    out_bf16 = jax.block_until_ready(
        onestep_kernel_forward(x, src, dst, edge_attr, params,
                               compute_dtype=jnp.bfloat16))
    assert jnp.allclose(out_bf16, ref, atol=5e-2, rtol=5e-2), (
        f"bf16 path: max abs diff {jnp.max(jnp.abs(out_bf16 - ref))}")

    # Multi-tile grid (exercises the accumulate-across-edge-tiles path).
    E2 = 300
    edge_attr2 = jax.random.normal(keys[13], (E2, F), dtype=jnp.float32)
    src2 = jax.random.randint(keys[2], (E2,), 0, N, dtype=jnp.int32)
    dst2 = jax.random.randint(keys[3], (E2,), 0, N, dtype=jnp.int32)
    ref2 = ref_forward(x, src2, dst2, edge_attr2, params, N, C)
    out2 = jax.block_until_ready(
        onestep_kernel_forward(x, src2, dst2, edge_attr2, params,
                               compute_dtype=jnp.float32, tile_e=128))
    assert jnp.allclose(out2, ref2, atol=1e-3, rtol=1e-3), (
        f"multi-tile path: max abs diff {jnp.max(jnp.abs(out2 - ref2))}")

    print("KERNEL_OK")
</pallas_src>

<mosaic_0001>
module attributes {stable_mosaic.version = 11 : i64} {
  func.func @nnconv_prelu_kernel(%arg0: i32, %arg1: memref<6x128xf32, #tpu.memory_space<vmem>>, %arg2: memref<1x128xi32, #tpu.memory_space<vmem>>, %arg3: memref<128x1xi32, #tpu.memory_space<vmem>>, %arg4: memref<4x16xf32, #tpu.memory_space<vmem>>, %arg5: memref<1x16xf32, #tpu.memory_space<vmem>>, %arg6: memref<32x6xf32, #tpu.memory_space<vmem>>, %arg7: memref<32x1xf32, #tpu.memory_space<vmem>>, %arg8: memref<32x32xf32, #tpu.memory_space<vmem>>, %arg9: memref<32x1xf32, #tpu.memory_space<vmem>>, %arg10: memref<32x32xf32, #tpu.memory_space<vmem>>, %arg11: memref<32x1xf32, #tpu.memory_space<vmem>>, %arg12: memref<4x128xf32, #tpu.memory_space<vmem>>, %arg13: memref<4x4xf32, #tpu.memory_space<vmem>>, %arg14: memref<4x4xf32, #tpu.memory_space<vmem>>, %arg15: memref<4x1xf32, #tpu.memory_space<vmem>>, %arg16: memref<4xf32, #tpu.memory_space<smem>>, %arg17: memref<4x16xf32, #tpu.memory_space<vmem>>) attributes {dimension_semantics = [#tpu.dimension_semantics<arbitrary>], iteration_bounds = array<i64: 1>, scalar_prefetch = 0 : i64, scratch_operands = 0 : i64, tpu.core_type = #tpu.core_type<tc>, window_params = [{transform_indices = @transform_0, window_bounds = array<i64: 6, 128>}, {transform_indices = @transform_1, window_bounds = array<i64: 1, 128>}, {transform_indices = @transform_2, window_bounds = array<i64: 128, 1>}, {pipeline_mode = #tpu.pipeline_mode<synchronous>, transform_indices = @transform_3, window_bounds = array<i64: 4, 16>}, {pipeline_mode = #tpu.pipeline_mode<synchronous>, transform_indices = @transform_4, window_bounds = array<i64: 1, 16>}, {pipeline_mode = #tpu.pipeline_mode<synchronous>, transform_indices = @transform_5, window_bounds = array<i64: 32, 6>}, {pipeline_mode = #tpu.pipeline_mode<synchronous>, transform_indices = @transform_6, window_bounds = array<i64: 32, 1>}, {pipeline_mode = #tpu.pipeline_mode<synchronous>, transform_indices = @transform_7, window_bounds = array<i64: 32, 32>}, {pipeline_mode = #tpu.pipeline_mode<synchronous>, transform_indices = @transform_8, window_bounds = array<i64: 32, 1>}, {pipeline_mode = #tpu.pipeline_mode<synchronous>, transform_indices = @transform_9, window_bounds = array<i64: 32, 32>}, {pipeline_mode = #tpu.pipeline_mode<synchronous>, transform_indices = @transform_10, window_bounds = array<i64: 32, 1>}, {pipeline_mode = #tpu.pipeline_mode<synchronous>, transform_indices = @transform_11, window_bounds = array<i64: 4, 128>}, {pipeline_mode = #tpu.pipeline_mode<synchronous>, transform_indices = @transform_12, window_bounds = array<i64: 4, 4>}, {pipeline_mode = #tpu.pipeline_mode<synchronous>, transform_indices = @transform_13, window_bounds = array<i64: 4, 4>}, {pipeline_mode = #tpu.pipeline_mode<synchronous>, transform_indices = @transform_14, window_bounds = array<i64: 4, 1>}, {transform_indices = @transform_15, window_bounds = array<i64: 4>}, {pipeline_mode = #tpu.pipeline_mode<synchronous>, transform_indices = @transform_16, window_bounds = array<i64: 4, 16>}]} {
    %c0_i32 = arith.constant 0 : i32
    %0 = arith.cmpi eq, %arg0, %c0_i32 : i32
    %1 = arith.extui %0 : i1 to i32
    %c0_i32_0 = arith.constant 0 : i32
    %2 = arith.cmpi ne, %1, %c0_i32_0 : i32
    scf.if %2 {
      %cst_40 = arith.constant 0.000000e+00 : f32
      %77 = vector.broadcast %cst_40 : f32 to vector<4x16xf32>
      %c0_41 = arith.constant 0 : index
      %c0_42 = arith.constant 0 : index
      %78 = vector.load %arg17[%c0_41, %c0_42] : memref<4x16xf32, #tpu.memory_space<vmem>>, vector<4x16xf32>
      tpu.vector_store %arg17[%c0_41, %c0_42], %77 {strides = array<i32>} : memref<4x16xf32, #tpu.memory_space<vmem>>, vector<4x16xf32>,
    } else {
    }
    %c0 = arith.constant 0 : index
    %3 = memref.load %arg16[%c0] : memref<4xf32, #tpu.memory_space<smem>>
    %c1 = arith.constant 1 : index
    %4 = memref.load %arg16[%c1] : memref<4xf32, #tpu.memory_space<smem>>
    %c2 = arith.constant 2 : index
    %5 = memref.load %arg16[%c2] : memref<4xf32, #tpu.memory_space<smem>>
    %c3 = arith.constant 3 : index
    %6 = memref.load %arg16[%c3] : memref<4xf32, #tpu.memory_space<smem>>
    %c0_1 = arith.constant 0 : index
    %c0_2 = arith.constant 0 : index
    %7 = vector.load %arg1[%c0_1, %c0_2] : memref<6x128xf32, #tpu.memory_space<vmem>>, vector<6x128xf32>
    %c0_3 = arith.constant 0 : index
    %c0_4 = arith.constant 0 : index
    %8 = vector.load %arg6[%c0_3, %c0_4] : memref<32x6xf32, #tpu.memory_space<vmem>>, vector<32x6xf32>
    %cst = arith.constant dense<0.000000e+00> : vector<32x128xf32>
    %9 = tpu.matmul %8, %7, %cst {dimension_numbers = #tpu.dot_dimension_numbers<[1], [0], [0], [1], [0, 0, 1, 1], [], []>} : vector<32x6xf32>, vector<6x128xf32>, vector<32x128xf32> -> vector<32x128xf32>
    %c0_5 = arith.constant 0 : index
    %c0_6 = arith.constant 0 : index
    %10 = vector.load %arg7[%c0_5, %c0_6] : memref<32x1xf32, #tpu.memory_space<vmem>>, vector<32x1xf32>
    %11 = vector.broadcast %10 : vector<32x1xf32> to vector<32x128xf32>
    %12 = arith.addf %9, %11 : vector<32x128xf32>
    %cst_7 = arith.constant 0.000000e+00 : f32
    %13 = vector.broadcast %cst_7 : f32 to vector<32x128xf32>
    %14 = arith.cmpf oge, %12, %13 : vector<32x128xf32>
    %15 = vector.broadcast %3 : f32 to vector<32x128xf32>
    %16 = arith.mulf %15, %12 : vector<32x128xf32>
    %17 = arith.select %14, %12, %16 : vector<32x128xi1>, vector<32x128xf32>
    %c0_8 = arith.constant 0 : index
    %c0_9 = arith.constant 0 : index
    %18 = vector.load %arg8[%c0_8, %c0_9] : memref<32x32xf32, #tpu.memory_space<vmem>>, vector<32x32xf32>
    %cst_10 = arith.constant dense<0.000000e+00> : vector<32x128xf32>
    %19 = tpu.matmul %18, %17, %cst_10 {dimension_numbers = #tpu.dot_dimension_numbers<[1], [0], [0], [1], [0, 0, 1, 1], [], []>} : vector<32x32xf32>, vector<32x128xf32>, vector<32x128xf32> -> vector<32x128xf32>
    %c0_11 = arith.constant 0 : index
    %c0_12 = arith.constant 0 : index
    %20 = vector.load %arg9[%c0_11, %c0_12] : memref<32x1xf32, #tpu.memory_space<vmem>>, vector<32x1xf32>
    %21 = vector.broadcast %20 : vector<32x1xf32> to vector<32x128xf32>
    %22 = arith.addf %19, %21 : vector<32x128xf32>
    %cst_13 = arith.constant 0.000000e+00 : f32
    %23 = vector.broadcast %cst_13 : f32 to vector<32x128xf32>
    %24 = arith.cmpf oge, %22, %23 : vector<32x128xf32>
    %25 = vector.broadcast %4 : f32 to vector<32x128xf32>
    %26 = arith.mulf %25, %22 : vector<32x128xf32>
    %27 = arith.select %24, %22, %26 : vector<32x128xi1>, vector<32x128xf32>
    %c0_14 = arith.constant 0 : index
    %c0_15 = arith.constant 0 : index
    %28 = vector.load %arg10[%c0_14, %c0_15] : memref<32x32xf32, #tpu.memory_space<vmem>>, vector<32x32xf32>
    %cst_16 = arith.constant dense<0.000000e+00> : vector<32x128xf32>
    %29 = tpu.matmul %28, %27, %cst_16 {dimension_numbers = #tpu.dot_dimension_numbers<[1], [0], [0], [1], [0, 0, 1, 1], [], []>} : vector<32x32xf32>, vector<32x128xf32>, vector<32x128xf32> -> vector<32x128xf32>
    %c0_17 = arith.constant 0 : index
    %c0_18 = arith.constant 0 : index
    %30 = vector.load %arg11[%c0_17, %c0_18] : memref<32x1xf32, #tpu.memory_space<vmem>>, vector<32x1xf32>
    %31 = vector.broadcast %30 : vector<32x1xf32> to vector<32x128xf32>
    %32 = arith.addf %29, %31 : vector<32x128xf32>
    %cst_19 = arith.constant 0.000000e+00 : f32
    %33 = vector.broadcast %cst_19 : f32 to vector<32x128xf32>
    %34 = arith.cmpf oge, %32, %33 : vector<32x128xf32>
    %35 = vector.broadcast %5 : f32 to vector<32x128xf32>
    %36 = arith.mulf %35, %32 : vector<32x128xf32>
    %37 = arith.select %34, %32, %36 : vector<32x128xi1>, vector<32x128xf32>
    %38 = tpu.iota {dimensions = array<i32: 0>} : vector<16x128xi32>
    %c0_20 = arith.constant 0 : index
    %c0_21 = arith.constant 0 : index
    %39 = vector.load %arg2[%c0_20, %c0_21] : memref<1x128xi32, #tpu.memory_space<vmem>>, vector<1x128xi32>
    %40 = vector.broadcast %39 : vector<1x128xi32> to vector<16x128xi32>
    %41 = arith.cmpi eq, %38, %40 : vector<16x128xi32>
    %42 = arith.extui %41 : vector<16x128xi1> to vector<16x128xi32>
    %43 = arith.sitofp %42 : vector<16x128xi32> to vector<16x128xf32>
    %c0_22 = arith.constant 0 : index
    %c0_23 = arith.constant 0 : index
    %44 = vector.load %arg4[%c0_22, %c0_23] : memref<4x16xf32, #tpu.memory_space<vmem>>, vector<4x16xf32>
    %cst_24 = arith.constant dense<0.000000e+00> : vector<4x128xf32>
    %45 = tpu.matmul %44, %43, %cst_24 {dimension_numbers = #tpu.dot_dimension_numbers<[1], [0], [0], [1], [0, 0, 1, 1], [], []>} : vector<4x16xf32>, vector<16x128xf32>, vector<4x128xf32> -> vector<4x128xf32>
    %46 = vector.extract_strided_slice %45 {offsets = [0, 0], sizes = [1, 128], strides = [1, 1]} : vector<4x128xf32> to vector<1x128xf32>
    %47 = vector.broadcast %46 : vector<1x128xf32> to vector<32x128xf32>
    %48 = arith.mulf %47, %37 : vector<32x128xf32>
    %49 = vector.extract_strided_slice %45 {offsets = [1, 0], sizes = [1, 128], strides = [1, 1]} : vector<4x128xf32> to vector<1x128xf32>
    %50 = vector.broadcast %49 : vector<1x128xf32> to vector<32x128xf32>
    %51 = arith.mulf %50, %37 : vector<32x128xf32>
    %52 = vector.extract_strided_slice %45 {offsets = [2, 0], sizes = [1, 128], strides = [1, 1]} : vector<4x128xf32> to vector<1x128xf32>
    %53 = vector.broadcast %52 : vector<1x128xf32> to vector<32x128xf32>
    %54 = arith.mulf %53, %37 : vector<32x128xf32>
    %55 = vector.extract_strided_slice %45 {offsets = [3, 0], sizes = [1, 128], strides = [1, 1]} : vector<4x128xf32> to vector<1x128xf32>
    %56 = vector.broadcast %55 : vector<1x128xf32> to vector<32x128xf32>
    %57 = arith.mulf %56, %37 : vector<32x128xf32>
    %58 = tpu.concatenate %48, %51, %54, %57 in 0 : vector<32x128xf32>, vector<32x128xf32>, vector<32x128xf32>, vector<32x128xf32> -> vector<128x128xf32>
    %c0_25 = arith.constant 0 : index
    %c0_26 = arith.constant 0 : index
    %59 = vector.load %arg12[%c0_25, %c0_26] : memref<4x128xf32, #tpu.memory_space<vmem>>, vector<4x128xf32>
    %cst_27 = arith.constant dense<0.000000e+00> : vector<4x128xf32>
    %60 = tpu.matmul %59, %58, %cst_27 {dimension_numbers = #tpu.dot_dimension_numbers<[1], [0], [0], [1], [0, 0, 1, 1], [], []>} : vector<4x128xf32>, vector<128x128xf32>, vector<4x128xf32> -> vector<4x128xf32>
    %c0_28 = arith.constant 0 : index
    %c0_29 = arith.constant 0 : index
    %61 = vector.load %arg13[%c0_28, %c0_29] : memref<4x4xf32, #tpu.memory_space<vmem>>, vector<4x4xf32>
    %cst_30 = arith.constant dense<0.000000e+00> : vector<4x128xf32>
    %62 = tpu.matmul %61, %45, %cst_30 {dimension_numbers = #tpu.dot_dimension_numbers<[1], [0], [0], [1], [0, 0, 1, 1], [], []>} : vector<4x4xf32>, vector<4x128xf32>, vector<4x128xf32> -> vector<4x128xf32>
    %63 = arith.addf %60, %62 : vector<4x128xf32>
    %64 = tpu.iota {dimensions = array<i32: 1>} : vector<128x16xi32>
    %c0_31 = arith.constant 0 : index
    %c0_32 = arith.constant 0 : index
    %65 = vector.load %arg3[%c0_31, %c0_32] : memref<128x1xi32, #tpu.memory_space<vmem>>, vector<128x1xi32>
    %66 = vector.broadcast %65 : vector<128x1xi32> to vector<128x16xi32>
    %67 = arith.cmpi eq, %64, %66 : vector<128x16xi32>
    %68 = arith.extui %67 : vector<128x16xi1> to vector<128x16xi32>
    %69 = arith.sitofp %68 : vector<128x16xi32> to vector<128x16xf32>
    %c0_33 = arith.constant 0 : index
    %c0_34 = arith.constant 0 : index
    %70 = vector.load %arg17[%c0_33, %c0_34] : memref<4x16xf32, #tpu.memory_space<vmem>>, vector<4x16xf32>
    %cst_35 = arith.constant dense<0.000000e+00> : vector<4x16xf32>
    %71 = tpu.matmul %63, %69, %cst_35 {dimension_numbers = #tpu.dot_dimension_numbers<[1], [0], [0], [1], [0, 0, 1, 1], [], []>} : vector<4x128xf32>, vector<128x16xf32>, vector<4x16xf32> -> vector<4x16xf32>
    %72 = arith.addf %70, %71 : vector<4x16xf32>
    %c0_36 = arith.constant 0 : index
    %c0_37 = arith.constant 0 : index
    %73 = vector.load %arg17[%c0_36, %c0_37] : memref<4x16xf32, #tpu.memory_space<vmem>>, vector<4x16xf32>
    tpu.vector_store %arg17[%c0_36, %c0_37], %72 {strides = array<i32>} : memref<4x16xf32, #tpu.memory_space<vmem>>, vector<4x16xf32>,
    %c0_i32_38 = arith.constant 0 : i32
    %74 = arith.cmpi eq, %arg0, %c0_i32_38 : i32
    %75 = arith.extui %74 : i1 to i32
    %c0_i32_39 = arith.constant 0 : i32
    %76 = arith.cmpi ne, %75, %c0_i32_39 : i32
    scf.if %76 {
      %c0_40 = arith.constant 0 : index
      %c0_41 = arith.constant 0 : index
      %77 = vector.load %arg17[%c0_40, %c0_41] : memref<4x16xf32, #tpu.memory_space<vmem>>, vector<4x16xf32>
      %c0_42 = arith.constant 0 : index
      %c0_43 = arith.constant 0 : index
      %78 = vector.load %arg5[%c0_42, %c0_43] : memref<1x16xf32, #tpu.memory_space<vmem>>, vector<1x16xf32>
      %79 = vector.broadcast %78 : vector<1x16xf32> to vector<4x16xf32>
      %80 = arith.mulf %77, %79 : vector<4x16xf32>
      %c0_44 = arith.constant 0 : index
      %c0_45 = arith.constant 0 : index
      %81 = vector.load %arg14[%c0_44, %c0_45] : memref<4x4xf32, #tpu.memory_space<vmem>>, vector<4x4xf32>
      %c0_46 = arith.constant 0 : index
      %c0_47 = arith.constant 0 : index
      %82 = vector.load %arg4[%c0_46, %c0_47] : memref<4x16xf32, #tpu.memory_space<vmem>>, vector<4x16xf32>
      %cst_48 = arith.constant dense<0.000000e+00> : vector<4x16xf32>
      %83 = tpu.matmul %81, %82, %cst_48 {dimension_numbers = #tpu.dot_dimension_numbers<[1], [0], [0], [1], [0, 0, 1, 1], [], []>} : vector<4x4xf32>, vector<4x16xf32>, vector<4x16xf32> -> vector<4x16xf32>
      %84 = arith.addf %80, %83 : vector<4x16xf32>
      %c0_49 = arith.constant 0 : index
      %c0_50 = arith.constant 0 : index
      %85 = vector.load %arg15[%c0_49, %c0_50] : memref<4x1xf32, #tpu.memory_space<vmem>>, vector<4x1xf32>
      %86 = vector.broadcast %85 : vector<4x1xf32> to vector<4x16xf32>
      %87 = arith.addf %84, %86 : vector<4x16xf32>
      %cst_51 = arith.constant 0.000000e+00 : f32
      %88 = vector.broadcast %cst_51 : f32 to vector<4x16xf32>
      %89 = arith.cmpf oge, %87, %88 : vector<4x16xf32>
      %90 = vector.broadcast %6 : f32 to vector<4x16xf32>
      %91 = arith.mulf %90, %87 : vector<4x16xf32>
      %92 = arith.select %89, %87, %91 : vector<4x16xi1>, vector<4x16xf32>
      %c0_52 = arith.constant 0 : index
      %c0_53 = arith.constant 0 : index
      %93 = vector.load %arg17[%c0_52, %c0_53] : memref<4x16xf32, #tpu.memory_space<vmem>>, vector<4x16xf32>
      tpu.vector_store %arg17[%c0_52, %c0_53], %92 {strides = array<i32>} : memref<4x16xf32, #tpu.memory_space<vmem>>, vector<4x16xf32>,
    } else {
    }
    return
  }
  func.func @transform_0(%arg0: i32) -> (i32, i32) {
    %c0_i32 = arith.constant 0 : i32
    %c0_i32_0 = arith.constant 0 : i32
    return %c0_i32, %arg0 : i32, i32
  }
  func.func @transform_1(%arg0: i32) -> (i32, i32) {
    %c0_i32 = arith.constant 0 : i32
    %c0_i32_0 = arith.constant 0 : i32
    return %c0_i32, %arg0 : i32, i32
  }
  func.func @transform_2(%arg0: i32) -> (i32, i32) {
    %c0_i32 = arith.constant 0 : i32
    %c0_i32_0 = arith.constant 0 : i32
    return %arg0, %c0_i32 : i32, i32
  }
  func.func @transform_3(%arg0: i32) -> (i32, i32) {
    %c0_i32 = arith.constant 0 : i32
    %c0_i32_0 = arith.constant 0 : i32
    %c0_i32_1 = arith.constant 0 : i32
    return %c0_i32, %c0_i32_0 : i32, i32
  }
  func.func @transform_4(%arg0: i32) -> (i32, i32) {
    %c0_i32 = arith.constant 0 : i32
    %c0_i32_0 = arith.constant 0 : i32
    %c0_i32_1 = arith.constant 0 : i32
    return %c0_i32, %c0_i32_0 : i32, i32
  }
  func.func @transform_5(%arg0: i32) -> (i32, i32) {
    %c0_i32 = arith.constant 0 : i32
    %c0_i32_0 = arith.constant 0 : i32
    %c0_i32_1 = arith.constant 0 : i32
    return %c0_i32, %c0_i32_0 : i32, i32
  }
  func.func @transform_6(%arg0: i32) -> (i32, i32) {
    %c0_i32 = arith.constant 0 : i32
    %c0_i32_0 = arith.constant 0 : i32
    %c0_i32_1 = arith.constant 0 : i32
    return %c0_i32, %c0_i32_0 : i32, i32
  }
  func.func @transform_7(%arg0: i32) -> (i32, i32) {
    %c0_i32 = arith.constant 0 : i32
    %c0_i32_0 = arith.constant 0 : i32
    %c0_i32_1 = arith.constant 0 : i32
    return %c0_i32, %c0_i32_0 : i32, i32
  }
  func.func @transform_8(%arg0: i32) -> (i32, i32) {
    %c0_i32 = arith.constant 0 : i32
    %c0_i32_0 = arith.constant 0 : i32
    %c0_i32_1 = arith.constant 0 : i32
    return %c0_i32, %c0_i32_0 : i32, i32
  }
  func.func @transform_9(%arg0: i32) -> (i32, i32) {
    %c0_i32 = arith.constant 0 : i32
    %c0_i32_0 = arith.constant 0 : i32
    %c0_i32_1 = arith.constant 0 : i32
    return %c0_i32, %c0_i32_0 : i32, i32
  }
  func.func @transform_10(%arg0: i32) -> (i32, i32) {
    %c0_i32 = arith.constant 0 : i32
    %c0_i32_0 = arith.constant 0 : i32
    %c0_i32_1 = arith.constant 0 : i32
    return %c0_i32, %c0_i32_0 : i32, i32
  }
  func.func @transform_11(%arg0: i32) -> (i32, i32) {
    %c0_i32 = arith.constant 0 : i32
    %c0_i32_0 = arith.constant 0 : i32
    %c0_i32_1 = arith.constant 0 : i32
    return %c0_i32, %c0_i32_0 : i32, i32
  }
  func.func @transform_12(%arg0: i32) -> (i32, i32) {
    %c0_i32 = arith.constant 0 : i32
    %c0_i32_0 = arith.constant 0 : i32
    %c0_i32_1 = arith.constant 0 : i32
    return %c0_i32, %c0_i32_0 : i32, i32
  }
  func.func @transform_13(%arg0: i32) -> (i32, i32) {
    %c0_i32 = arith.constant 0 : i32
    %c0_i32_0 = arith.constant 0 : i32
    %c0_i32_1 = arith.constant 0 : i32
    return %c0_i32, %c0_i32_0 : i32, i32
  }
  func.func @transform_14(%arg0: i32) -> (i32, i32) {
    %c0_i32 = arith.constant 0 : i32
    %c0_i32_0 = arith.constant 0 : i32
    %c0_i32_1 = arith.constant 0 : i32
    return %c0_i32, %c0_i32_0 : i32, i32
  }
  func.func @transform_15(%arg0: i32) -> i32 {
    %c0_i32 = arith.constant 0 : i32
    %c0_i32_0 = arith.constant 0 : i32
    return %c0_i32 : i32
  }
  func.func @transform_16(%arg0: i32) -> (i32, i32) {
    %c0_i32 = arith.constant 0 : i32
    %c0_i32_0 = arith.constant 0 : i32
    %c0_i32_1 = arith.constant 0 : i32
    return %c0_i32, %c0_i32_0 : i32, i32
  }
}

</mosaic_0001>

<llo_original>
// kernel: tpu_custom_call.1
$region0: #{tpu_custom_call.1}
  #allocation0 [shape = 'u32[]', space=smem, size = 0x4, offset = 0x4, fixed_abs, tag = 'smem constant byte address 0x4 - core index']
  #allocation1 [shape = 'u32[144,128]{1,0:T(1,128)}', space=vmem, size = 0x12000, scoped, tag = 'internal scratch']
  %s0 = inlined_call_operand.vmem [shape: f32[6,128], index: 0, kind: input, shape index: {}]
  %s1 = inlined_call_operand.vmem [shape: s32[1,128], index: 1, kind: input, shape index: {}]
  %s2 = inlined_call_operand.vmem [shape: s32[128,1], index: 2, kind: input, shape index: {}]
  %s3 = inlined_call_operand.vmem [shape: f32[4,16], index: 3, kind: input, shape index: {}]
  %s4 = inlined_call_operand.vmem [shape: f32[1,16], index: 4, kind: input, shape index: {}]
  %s5 = inlined_call_operand.vmem [shape: f32[32,6], index: 5, kind: input, shape index: {}]
  %s6 = inlined_call_operand.vmem [shape: f32[32,1], index: 6, kind: input, shape index: {}]
  %s7 = inlined_call_operand.vmem [shape: f32[32,32], index: 7, kind: input, shape index: {}]
  %s8 = inlined_call_operand.vmem [shape: f32[32,1], index: 8, kind: input, shape index: {}]
  %s9 = inlined_call_operand.vmem [shape: f32[32,32], index: 9, kind: input, shape index: {}]
  %s10 = inlined_call_operand.vmem [shape: f32[32,1], index: 10, kind: input, shape index: {}]
  %s11 = inlined_call_operand.vmem [shape: f32[4,128], index: 11, kind: input, shape index: {}]
  %s12 = inlined_call_operand.vmem [shape: f32[4,4], index: 12, kind: input, shape index: {}]
  %s13 = inlined_call_operand.vmem [shape: f32[4,4], index: 13, kind: input, shape index: {}]
  %s14 = inlined_call_operand.vmem [shape: f32[4,1], index: 14, kind: input, shape index: {}]
  %s15 = inlined_call_operand.vmem [shape: f32[4], index: 15, kind: input, shape index: {}]
  %s16 = inlined_call_operand.hbm [shape: f32[4,16], index: 16, kind: output, shape index: {}]
  %s17 = sld [smem:[#allocation0]]
  $region86: #{tpu_custom_call.1} parent=0
    _
  %s19 = ssub.s32 1, %s17
  %s20 = scalar_select 0, %s19, %s17
  $region1: #{tpu_custom_call.1} parent=0
    #allocation2 [shape = 'u8[512]{0}', space=smem, size = 0x200, scoped, tag = 'input window, operand 15, single buffered']
    #allocation3 [shape = 's32[1]{0}', space=sflag, size = 0x4, scoped, tag = 'scoped memory for tpu_custom_call.1']
    #allocation4 [shape = 's32[1]{0}', space=sflag, size = 0x4, scoped, tag = 'scoped memory for tpu_custom_call.1']
    #allocation5 [shape = 'u8[2048]{0}', space=vmem, size = 0x800, scoped, tag = 'output window, operand 0, single buffered']
    %21 = vsyncpa [#allocation4], 0
    %22 = vsyncpa [#allocation3], 0
    // Predicated region
    $region2: #{tpu_custom_call.1} parent=1 // pred_check
      _
    $region3: #{tpu_custom_call.1} parent=1 // pred_check_branch
      %24 = sbr.rel (0) target = $region5
    $region4: #{tpu_custom_call.1} parent=1 // pred_region
      _
    $region5: #{tpu_custom_call.1} parent=1 // pred_fallthru
      _
    // Predicated region
    $region6: #{tpu_custom_call.1} parent=1 // pred_check
      _
    $region7: #{tpu_custom_call.1} parent=1 // pred_check_branch
      %26 = sbr.rel (0) target = $region9
    $region8: #{tpu_custom_call.1} parent=1 // pred_region
      _
    $region9: #{tpu_custom_call.1} parent=1 // pred_fallthru
      _
    // Predicated region
    $region10: #{tpu_custom_call.1} parent=1 // pred_check
      _
    $region11: #{tpu_custom_call.1} parent=1 // pred_check_branch
      %28 = sbr.rel (0) target = $region13
    $region12: #{tpu_custom_call.1} parent=1 // pred_region
      _
    $region13: #{tpu_custom_call.1} parent=1 // pred_fallthru
      _
    // Predicated region
    $region14: #{tpu_custom_call.1} parent=1 // pred_check
      _
    $region15: #{tpu_custom_call.1} parent=1 // pred_check_branch
      %30 = sbr.rel (0) target = $region17
    $region16: #{tpu_custom_call.1} parent=1 // pred_region
      _
    $region17: #{tpu_custom_call.1} parent=1 // pred_fallthru
      _
    // Predicated region
    $region18: #{tpu_custom_call.1} parent=1 // pred_check
      _
    $region19: #{tpu_custom_call.1} parent=1 // pred_check_branch
      %32 = sbr.rel (0) target = $region21
    $region20: #{tpu_custom_call.1} parent=1 // pred_region
      _
    $region21: #{tpu_custom_call.1} parent=1 // pred_fallthru
      _
    // Predicated region
    $region22: #{tpu_custom_call.1} parent=1 // pred_check
      _
    $region23: #{tpu_custom_call.1} parent=1 // pred_check_branch
      %34 = sbr.rel (0) target = $region25
    $region24: #{tpu_custom_call.1} parent=1 // pred_region
      _
    $region25: #{tpu_custom_call.1} parent=1 // pred_fallthru
      _
    // Predicated region
    $region26: #{tpu_custom_call.1} parent=1 // pred_check
      _
    $region27: #{tpu_custom_call.1} parent=1 // pred_check_branch
      %36 = sbr.rel (0) target = $region29
    $region28: #{tpu_custom_call.1} parent=1 // pred_region
      _
    $region29: #{tpu_custom_call.1} parent=1 // pred_fallthru
      _
    // Predicated region
    $region30: #{tpu_custom_call.1} parent=1 // pred_check
      _
    $region31: #{tpu_custom_call.1} parent=1 // pred_check_branch
      %38 = sbr.rel (0) target = $region33
    $region32: #{tpu_custom_call.1} parent=1 // pred_region
      _
    $region33: #{tpu_custom_call.1} parent=1 // pred_fallthru
      _
    // Predicated region
    $region34: #{tpu_custom_call.1} parent=1 // pred_check
      _
    $region35: #{tpu_custom_call.1} parent=1 // pred_check_branch
      %40 = sbr.rel (0) target = $region37
    $region36: #{tpu_custom_call.1} parent=1 // pred_region
      _
    $region37: #{tpu_custom_call.1} parent=1 // pred_fallthru
      _
    // Predicated region
    $region38: #{tpu_custom_call.1} parent=1 // pred_check
      _
    $region39: #{tpu_custom_call.1} parent=1 // pred_check_branch
      %42 = sbr.rel (0) target = $region41
    $region40: #{tpu_custom_call.1} parent=1 // pred_region
      _
    $region41: #{tpu_custom_call.1} parent=1 // pred_fallthru
      _
    // Predicated region
    $region42: #{tpu_custom_call.1} parent=1 // pred_check
      _
    $region43: #{tpu_custom_call.1} parent=1 // pred_check_branch
      %44 = sbr.rel (0) target = $region45
    $region44: #{tpu_custom_call.1} parent=1 // pred_region
      _
    $region45: #{tpu_custom_call.1} parent=1 // pred_fallthru
      _
    // Predicated region
    $region46: #{tpu_custom_call.1} parent=1 // pred_check
      _
    $region47: #{tpu_custom_call.1} parent=1 // pred_check_branch
      %46 = sbr.rel (0) target = $region49
    $region48: #{tpu_custom_call.1} parent=1 // pred_region
      _
    $region49: #{tpu_custom_call.1} parent=1 // pred_fallthru
      _
    // Predicated region
    $region50: #{tpu_custom_call.1} parent=1 // pred_check
      _
    $region51: #{tpu_custom_call.1} parent=1 // pred_check_branch
      %48 = sbr.rel (0) target = $region53
    $region52: #{tpu_custom_call.1} parent=1 // pred_region
      _
    $region53: #{tpu_custom_call.1} parent=1 // pred_fallthru
      _
    // Predicated region
    $region54: #{tpu_custom_call.1} parent=1 // pred_check
      _
    $region55: #{tpu_custom_call.1} parent=1 // pred_check_branch
      %50 = sbr.rel (0) target = $region57
    $region56: #{tpu_custom_call.1} parent=1 // pred_region
      _
    $region57: #{tpu_custom_call.1} parent=1 // pred_fallthru
      _
    // Predicated region
    $region58: #{tpu_custom_call.1} parent=1 // pred_check
      _
    $region59: #{tpu_custom_call.1} parent=1 // pred_check_branch
      %52 = sbr.rel (0) target = $region61
    $region60: #{tpu_custom_call.1} parent=1 // pred_region
      _
    $region61: #{tpu_custom_call.1} parent=1 // pred_fallthru
      _
    // Predicated region
    $region62: #{tpu_custom_call.1} parent=1 // pred_check
      _
    $region63: #{tpu_custom_call.1} parent=1 // pred_check_branch
      %54 = sbr.rel (0) target = $region65
    $region64: #{tpu_custom_call.1} parent=1 // pred_region
      %s56 = ssub.s32 16, 16
      %57 = vsyncadd [#allocation4], %s56
      %s59 = sshll.u32 %s15, 4
      %s60 = int_to_ptr.vmem [resolvable:$true] %s59
      %62 = dma.vmem_to_smem %s60, 16, [#allocation2], [#allocation4]
    $region65: #{tpu_custom_call.1} parent=1 // pred_fallthru
      _
    // Predicated region
    $region66: #{tpu_custom_call.1} parent=1 // pred_check
      _
    $region67: #{tpu_custom_call.1} parent=1 // pred_check_branch
      %64 = sbr.rel (0) target = $region69
    $region68: #{tpu_custom_call.1} parent=1 // pred_region
      %65 = dma.done [#allocation4], 16
    $region69: #{tpu_custom_call.1} parent=1 // pred_fallthru
      _
    %66 = sfence
    %p67 = scmp.eq.s32.totalorder 0, 0
    // Predicated region
    $region70: #{tpu_custom_call.1} parent=1 // pred_check
      %p68 = pneg %p67
    $region71: #{tpu_custom_call.1} parent=1 // pred_check_branch
      %70 = sbr.rel (%p68) target = $region73
    $region72: #{tpu_custom_call.1} parent=1 // pred_region
      %vm71 = vcmask 125952
      %72 = vst.msk [vmem:[#allocation5] sm:$0xf] %vm71, 0.0
    $region73: #{tpu_custom_call.1} parent=1 // pred_fallthru
      _
    %s73 = sld [smem:[#allocation2]]
    %s74 = sld [smem:[#allocation2 + $0x1]]
    %s75 = sld [smem:[#allocation2 + $0x2]]
    %s76 = sld [smem:[#allocation2 + $0x3]]
    %v77 = vld [vmem:[%s0] sm:$0x3f]
    %v78 = vld [vmem:[%s5] sm:$0xff]
    %v79 = vld [vmem:[%s5 + $0x8] sm:$0xff]
    %v80 = vld [vmem:[%s5 + $0x10] sm:$0xff]
    %v81 = vld [vmem:[%s5 + $0x18] sm:$0xff]
    %v82 = vld [vmem:[%s6] sm:$0xff]
    %v83 = vld [vmem:[%s6 + $0x8] sm:$0xff]
    %v84 = vld [vmem:[%s6 + $0x10] sm:$0xff]
    %v85 = vld [vmem:[%s6 + $0x18] sm:$0xff]
    %87 = vset.pattern.permute.xlu0 0
    %88 = vperm.xlu0 %87, %v82
    %v89 = vpop.permute.xlu0 %88
    %92 = vset.pattern.permute.xlu0 0
    %93 = vperm.xlu0 %92, %v83
    %v94 = vpop.permute.xlu0 %93
    %97 = vset.pattern.permute.xlu0 0
    %98 = vperm.xlu0 %97, %v84
    %v99 = vpop.permute.xlu0 %98
    %102 = vset.pattern.permute.xlu0 0
    %103 = vperm.xlu0 %102, %v85
    %v104 = vpop.permute.xlu0 %103
    %vm106 = vcmask 48128
    %v108 = vsel %vm106, %v78, 0
    %v111 = vsel %vm106, %v79, 0
    %v114 = vsel %vm106, %v80, 0
    %v117 = vsel %vm106, %v81, 0
    %vm119 = vcmask 1045504
    %v121 = vsel %vm119, %v77, 0
    %123 = vmatprep.subr.mxu0 0.0
    %124 = vmatpush1.msra.mxu0 0.0
    %125 = vmatprep.subr.mxu0 0.0
    %126 = vmatpush1.msra.mxu0 0.0
    %127 = vmatprep.subr.mxu0 0.0
    %128 = vmatpush1.msra.mxu0 0.0
    %129 = vmatprep.subr.mxu0 0.0
    %130 = vmatpush1.msra.mxu0 0.0
    %131 = vmatprep.subr.mxu0 0.0
    %132 = vmatpush1.msra.mxu0 0.0
    %133 = vmatprep.subr.mxu0 0.0
    %134 = vmatpush1.msra.mxu0 0.0
    %135 = vmatprep.subr.mxu0 0.0
    %136 = vmatpush1.msra.mxu0 0.0
    %137 = vmatprep.subr.mxu0 0.0
    %138 = vmatpush1.msra.mxu0 0.0
    %139 = vmatprep.subr.mxu0 0.0
    %140 = vmatpush1.msra.mxu0 0.0
    %141 = vmatprep.subr.mxu0 0.0
    %142 = vmatpush1.msra.mxu0 0.0
    %143 = vmatprep.subr.mxu0 0.0
    %144 = vmatpush1.msra.mxu0 0.0
    %145 = vmatprep.subr.mxu0 0.0
    %146 = vmatpush1.msra.mxu0 0.0
    %147 = vmatprep.subr.mxu0 0.0
    %148 = vmatpush1.msra.mxu0 0.0
    %149 = vmatprep.subr.mxu0 0.0
    %150 = vmatpush1.msra.mxu0 0.0
    %151 = vmatprep.subr.mxu0 0.0
    %152 = vmatpush1.msra.mxu0 0.0
    %153 = vmatprep.subr.mxu0 0.0
    %154 = vmatpush1.msra.mxu0 %v121
    %155 = vmatprep.subr.mxu0 0.0
    %156 = vmatpush2.msra.mxu0 0.0
    %157 = vmatprep.subr.mxu0 0.0
    %158 = vmatpush2.msra.mxu0 0.0
    %159 = vmatprep.subr.mxu0 0.0
    %160 = vmatpush2.msra.mxu0 0.0
    %161 = vmatprep.subr.mxu0 0.0
    %162 = vmatpush2.msra.mxu0 0.0
    %163 = vmatprep.subr.mxu0 0.0
    %164 = vmatpush2.msra.mxu0 0.0
    %165 = vmatprep.subr.mxu0 0.0
    %166 = vmatpush2.msra.mxu0 0.0
    %167 = vmatprep.subr.mxu0 0.0
    %168 = vmatpush2.msra.mxu0 0.0
    %169 = vmatprep.subr.mxu0 0.0
    %170 = vmatpush2.msra.mxu0 0.0
    %171 = vmatprep.subr.mxu0 0.0
    %172 = vmatpush2.msra.mxu0 0.0
    %173 = vmatprep.subr.mxu0 0.0
    %174 = vmatpush2.msra.mxu0 0.0
    %175 = vmatprep.subr.mxu0 0.0
    %176 = vmatpush2.msra.mxu0 0.0
    %177 = vmatprep.subr.mxu0 0.0
    %178 = vmatpush2.msra.mxu0 0.0
    %179 = vmatprep.subr.mxu0 0.0
    %180 = vmatpush2.msra.mxu0 0.0
    %181 = vmatprep.subr.mxu0 0.0
    %182 = vmatpush2.msra.mxu0 0.0
    %183 = vmatprep.subr.mxu0 0.0
    %184 = vmatpush2.msra.mxu0 0.0
    %185 = vmatprep.subr.mxu0 0.0
    %186 = vmatpush2.msra.mxu0 0.0
    %187 = vmatprep.mubr.f32.mxu0 0.0
    %188 = vmatmul.mubr.f32.gmra.mxu0 %v108
    %v189 = vpop.f32.mrf.mxu0
    %v190 = vadd.f32 %v89, %v189
    %v191 = vpop.f32.mrf.mxu0
    %192 = vmatprep.mubr.f32.mxu0 0.0
    %193 = vmatmul.mubr.f32.gmra.mxu0 %v111
    %v194 = vpop.f32.mrf.mxu0
    %v195 = vadd.f32 %v94, %v194
    %v196 = vpop.f32.mrf.mxu0
    %197 = vmatprep.mubr.f32.mxu0 0.0
    %198 = vmatmul.mubr.f32.gmra.mxu0 %v114
    %v199 = vpop.f32.mrf.mxu0
    %v200 = vadd.f32 %v99, %v199
    %v201 = vpop.f32.mrf.mxu0
    %202 = vmatprep.mubr.f32.mxu0 0.0
    %203 = vmatmul.mubr.f32.gmra.mxu0 %v117
    %v204 = vpop.f32.mrf.mxu0
    %v205 = vadd.f32 %v104, %v204
    %v206 = vpop.f32.mrf.mxu0
    %207 = vdwg.mxu0
    %vm208 = vcmp.ge.f32.partialorder %v190, 0.0
    %vm209 = vcmp.ge.f32.partialorder %v195, 0.0
    %vm210 = vcmp.ge.f32.partialorder %v200, 0.0
    %vm211 = vcmp.ge.f32.partialorder %v205, 0.0
    %v212 = vstv %s73
    %v213 = vmul.f32 %v212, %v190
    %v214 = vmul.f32 %v212, %v195
    %v215 = vmul.f32 %v212, %v200
    %v216 = vmul.f32 %v212, %v205
    %v217 = vsel %vm208, %v190, %v213
    %v218 = vsel %vm209, %v195, %v214
    %v219 = vsel %vm210, %v200, %v215
    %v220 = vsel %vm211, %v205, %v216
    %v221 = vld [vmem:[%s7] sm:$0xff]
    %v222 = vld [vmem:[%s7 + $0x8] sm:$0xff]
    %v223 = vld [vmem:[%s7 + $0x10] sm:$0xff]
    %v224 = vld [vmem:[%s7 + $0x18] sm:$0xff]
    %v225 = vld [vmem:[%s8] sm:$0xff]
    %v226 = vld [vmem:[%s8 + $0x8] sm:$0xff]
    %v227 = vld [vmem:[%s8 + $0x10] sm:$0xff]
    %v228 = vld [vmem:[%s8 + $0x18] sm:$0xff]
    %230 = vset.pattern.permute.xlu0 0
    %231 = vperm.xlu0 %230, %v225
    %v232 = vpop.permute.xlu0 %231
    %235 = vset.pattern.permute.xlu0 0
    %236 = vperm.xlu0 %235, %v226
    %v237 = vpop.permute.xlu0 %236
    %240 = vset.pattern.permute.xlu0 0
    %241 = vperm.xlu0 %240, %v227
    %v242 = vpop.permute.xlu0 %241
    %245 = vset.pattern.permute.xlu0 0
    %246 = vperm.xlu0 %245, %v228
    %v247 = vpop.permute.xlu0 %246
    %vm249 = vcmask 261120
    %v251 = vsel %vm249, %v221, 0
    %v254 = vsel %vm249, %v222, 0
    %v257 = vsel %vm249, %v223, 0
    %v260 = vsel %vm249, %v224, 0
    %262 = vmatprep.subr.mxu0 0.0
    %263 = vmatpush1.msra.mxu0 0.0
    %264 = vmatprep.subr.mxu0 0.0
    %265 = vmatpush1.msra.mxu0 0.0
    %266 = vmatprep.subr.mxu0 0.0
    %267 = vmatpush1.msra.mxu0 0.0
    %268 = vmatprep.subr.mxu0 0.0
    %269 = vmatpush1.msra.mxu0 0.0
    %270 = vmatprep.subr.mxu0 0.0
    %271 = vmatpush1.msra.mxu0 0.0
    %272 = vmatprep.subr.mxu0 0.0
    %273 = vmatpush1.msra.mxu0 0.0
    %274 = vmatprep.subr.mxu0 0.0
    %275 = vmatpush1.msra.mxu0 0.0
    %276 = vmatprep.subr.mxu0 0.0
    %277 = vmatpush1.msra.mxu0 0.0
    %278 = vmatprep.subr.mxu0 0.0
    %279 = vmatpush1.msra.mxu0 0.0
    %280 = vmatprep.subr.mxu0 0.0
    %281 = vmatpush1.msra.mxu0 0.0
    %282 = vmatprep.subr.mxu0 0.0
    %283 = vmatpush1.msra.mxu0 0.0
    %284 = vmatprep.subr.mxu0 0.0
    %285 = vmatpush1.msra.mxu0 0.0
    %286 = vmatprep.subr.mxu0 0.0
    %287 = vmatpush1.msra.mxu0 %v220
    %288 = vmatprep.subr.mxu0 0.0
    %289 = vmatpush1.msra.mxu0 %v219
    %290 = vmatprep.subr.mxu0 0.0
    %291 = vmatpush1.msra.mxu0 %v218
    %292 = vmatprep.subr.mxu0 0.0
    %293 = vmatpush1.msra.mxu0 %v217
    %294 = vmatprep.subr.mxu0 0.0
    %295 = vmatpush2.msra.mxu0 0.0
    %296 = vmatprep.subr.mxu0 0.0
    %297 = vmatpush2.msra.mxu0 0.0
    %298 = vmatprep.subr.mxu0 0.0
    %299 = vmatpush2.msra.mxu0 0.0
    %300 = vmatprep.subr.mxu0 0.0
    %301 = vmatpush2.msra.mxu0 0.0
    %302 = vmatprep.subr.mxu0 0.0
    %303 = vmatpush2.msra.mxu0 0.0
    %304 = vmatprep.subr.mxu0 0.0
    %305 = vmatpush2.msra.mxu0 0.0
    %306 = vmatprep.subr.mxu0 0.0
    %307 = vmatpush2.msra.mxu0 0.0
    %308 = vmatprep.subr.mxu0 0.0
    %309 = vmatpush2.msra.mxu0 0.0
    %310 = vmatprep.subr.mxu0 0.0
    %311 = vmatpush2.msra.mxu0 0.0
    %312 = vmatprep.subr.mxu0 0.0
    %313 = vmatpush2.msra.mxu0 0.0
    %314 = vmatprep.subr.mxu0 0.0
    %315 = vmatpush2.msra.mxu0 0.0
    %316 = vmatprep.subr.mxu0 0.0
    %317 = vmatpush2.msra.mxu0 0.0
    %318 = vmatprep.subr.mxu0 0.0
    %319 = vmatpush2.msra.mxu0 0.0
    %320 = vmatprep.subr.mxu0 0.0
    %321 = vmatpush2.msra.mxu0 0.0
    %322 = vmatprep.subr.mxu0 0.0
    %323 = vmatpush2.msra.mxu0 0.0
    %324 = vmatprep.subr.mxu0 0.0
    %325 = vmatpush2.msra.mxu0 0.0
    %326 = vmatprep.mubr.f32.mxu0 0.0
    %327 = vmatmul.mubr.f32.gmra.mxu0 %v251
    %v328 = vpop.f32.mrf.mxu0
    %v329 = vadd.f32 %v232, %v328
    %v330 = vpop.f32.mrf.mxu0
    %331 = vmatprep.mubr.f32.mxu0 0.0
    %332 = vmatmul.mubr.f32.gmra.mxu0 %v254
    %v333 = vpop.f32.mrf.mxu0
    %v334 = vadd.f32 %v237, %v333
    %v335 = vpop.f32.mrf.mxu0
    %336 = vmatprep.mubr.f32.mxu0 0.0
    %337 = vmatmul.mubr.f32.gmra.mxu0 %v257
    %v338 = vpop.f32.mrf.mxu0
    %v339 = vadd.f32 %v242, %v338
    %v340 = vpop.f32.mrf.mxu0
    %341 = vmatprep.mubr.f32.mxu0 0.0
    %342 = vmatmul.mubr.f32.gmra.mxu0 %v260
    %v343 = vpop.f32.mrf.mxu0
    %v344 = vadd.f32 %v247, %v343
    %v345 = vpop.f32.mrf.mxu0
    %346 = vdwg.mxu0
    %vm347 = vcmp.ge.f32.partialorder %v329, 0.0
    %vm348 = vcmp.ge.f32.partialorder %v334, 0.0
    %vm349 = vcmp.ge.f32.partialorder %v339, 0.0
    %vm350 = vcmp.ge.f32.partialorder %v344, 0.0
    %v351 = vstv %s74
    %v352 = vmul.f32 %v351, %v329
    %v353 = vmul.f32 %v351, %v334
    %v354 = vmul.f32 %v351, %v339
    %v355 = vmul.f32 %v351, %v344
    %v356 = vsel %vm347, %v329, %v352
    %v357 = vsel %vm348, %v334, %v353
    %v358 = vsel %vm349, %v339, %v354
    %v359 = vsel %vm350, %v344, %v355
    %v360 = vld [vmem:[%s9] sm:$0xff]
    %v361 = vld [vmem:[%s9 + $0x8] sm:$0xff]
    %v362 = vld [vmem:[%s9 + $0x10] sm:$0xff]
    %v363 = vld [vmem:[%s9 + $0x18] sm:$0xff]
    %v364 = vld [vmem:[%s10] sm:$0xff]
    %v365 = vld [vmem:[%s10 + $0x8] sm:$0xff]
    %v366 = vld [vmem:[%s10 + $0x10] sm:$0xff]
    %v367 = vld [vmem:[%s10 + $0x18] sm:$0xff]
    %369 = vset.pattern.permute.xlu0 0
    %370 = vperm.xlu0 %369, %v364
    %v371 = vpop.permute.xlu0 %370
    %374 = vset.pattern.permute.xlu0 0
    %375 = vperm.xlu0 %374, %v365
    %v376 = vpop.permute.xlu0 %375
    %379 = vset.pattern.permute.xlu0 0
    %380 = vperm.xlu0 %379, %v366
    %v381 = vpop.permute.xlu0 %380
    %384 = vset.pattern.permute.xlu0 0
    %385 = vperm.xlu0 %384, %v367
    %v386 = vpop.permute.xlu0 %385
    %v389 = vsel %vm249, %v360, 0
    %v392 = vsel %vm249, %v361, 0
    %v395 = vsel %vm249, %v362, 0
    %v398 = vsel %vm249, %v363, 0
    %400 = vmatprep.subr.mxu0 0.0
    %401 = vmatpush1.msra.mxu0 0.0
    %402 = vmatprep.subr.mxu0 0.0
    %403 = vmatpush1.msra.mxu0 0.0
    %404 = vmatprep.subr.mxu0 0.0
    %405 = vmatpush1.msra.mxu0 0.0
    %406 = vmatprep.subr.mxu0 0.0
    %407 = vmatpush1.msra.mxu0 0.0
    %408 = vmatprep.subr.mxu0 0.0
    %409 = vmatpush1.msra.mxu0 0.0
    %410 = vmatprep.subr.mxu0 0.0
    %411 = vmatpush1.msra.mxu0 0.0
    %412 = vmatprep.subr.mxu0 0.0
    %413 = vmatpush1.msra.mxu0 0.0
    %414 = vmatprep.subr.mxu0 0.0
    %415 = vmatpush1.msra.mxu0 0.0
    %416 = vmatprep.subr.mxu0 0.0
    %417 = vmatpush1.msra.mxu0 0.0
    %418 = vmatprep.subr.mxu0 0.0
    %419 = vmatpush1.msra.mxu0 0.0
    %420 = vmatprep.subr.mxu0 0.0
    %421 = vmatpush1.msra.mxu0 0.0
    %422 = vmatprep.subr.mxu0 0.0
    %423 = vmatpush1.msra.mxu0 0.0
    %424 = vmatprep.subr.mxu0 0.0
    %425 = vmatpush1.msra.mxu0 %v359
    %426 = vmatprep.subr.mxu0 0.0
    %427 = vmatpush1.msra.mxu0 %v358
    %428 = vmatprep.subr.mxu0 0.0
    %429 = vmatpush1.msra.mxu0 %v357
    %430 = vmatprep.subr.mxu0 0.0
    %431 = vmatpush1.msra.mxu0 %v356
    %432 = vmatprep.subr.mxu0 0.0
    %433 = vmatpush2.msra.mxu0 0.0
    %434 = vmatprep.subr.mxu0 0.0
    %435 = vmatpush2.msra.mxu0 0.0
    %436 = vmatprep.subr.mxu0 0.0
    %437 = vmatpush2.msra.mxu0 0.0
    %438 = vmatprep.subr.mxu0 0.0
    %439 = vmatpush2.msra.mxu0 0.0
    %440 = vmatprep.subr.mxu0 0.0
    %441 = vmatpush2.msra.mxu0 0.0
    %442 = vmatprep.subr.mxu0 0.0
    %443 = vmatpush2.msra.mxu0 0.0
    %444 = vmatprep.subr.mxu0 0.0
    %445 = vmatpush2.msra.mxu0 0.0
    %446 = vmatprep.subr.mxu0 0.0
    %447 = vmatpush2.msra.mxu0 0.0
    %448 = vmatprep.subr.mxu0 0.0
    %449 = vmatpush2.msra.mxu0 0.0
    %450 = vmatprep.subr.mxu0 0.0
    %451 = vmatpush2.msra.mxu0 0.0
    %452 = vmatprep.subr.mxu0 0.0
    %453 = vmatpush2.msra.mxu0 0.0
    %454 = vmatprep.subr.mxu0 0.0
    %455 = vmatpush2.msra.mxu0 0.0
    %456 = vmatprep.subr.mxu0 0.0
    %457 = vmatpush2.msra.mxu0 0.0
    %458 = vmatprep.subr.mxu0 0.0
    %459 = vmatpush2.msra.mxu0 0.0
    %460 = vmatprep.subr.mxu0 0.0
    %461 = vmatpush2.msra.mxu0 0.0
    %462 = vmatprep.subr.mxu0 0.0
    %463 = vmatpush2.msra.mxu0 0.0
    %464 = vmatprep.mubr.f32.mxu0 0.0
    %465 = vmatmul.mubr.f32.gmra.mxu0 %v389
    %v466 = vpop.f32.mrf.mxu0
    %v467 = vadd.f32 %v371, %v466
    %v468 = vpop.f32.mrf.mxu0
    %469 = vmatprep.mubr.f32.mxu0 0.0
    %470 = vmatmul.mubr.f32.gmra.mxu0 %v392
    %v471 = vpop.f32.mrf.mxu0
    %v472 = vadd.f32 %v376, %v471
    %v473 = vpop.f32.mrf.mxu0
    %474 = vmatprep.mubr.f32.mxu0 0.0
    %475 = vmatmul.mubr.f32.gmra.mxu0 %v395
    %v476 = vpop.f32.mrf.mxu0
    %v477 = vadd.f32 %v381, %v476
    %v478 = vpop.f32.mrf.mxu0
    %479 = vmatprep.mubr.f32.mxu0 0.0
    %480 = vmatmul.mubr.f32.gmra.mxu0 %v398
    %v481 = vpop.f32.mrf.mxu0
    %v482 = vadd.f32 %v386, %v481
    %v483 = vpop.f32.mrf.mxu0
    %484 = vdwg.mxu0
    %vm485 = vcmp.ge.f32.partialorder %v467, 0.0
    %vm486 = vcmp.ge.f32.partialorder %v472, 0.0
    %vm487 = vcmp.ge.f32.partialorder %v477, 0.0
    %vm488 = vcmp.ge.f32.partialorder %v482, 0.0
    %v489 = vstv %s75
    %v490 = vmul.f32 %v489, %v467
    %v491 = vmul.f32 %v489, %v472
    %v492 = vmul.f32 %v489, %v477
    %v493 = vmul.f32 %v489, %v482
    %v494 = vsel %vm485, %v467, %v490
    %v495 = vsel %vm486, %v472, %v491
    %v496 = vsel %vm487, %v477, %v492
    %v497 = vsel %vm488, %v482, %v493
    %v498 = vlaneseq
    %v499 = vshrl.u32 %v498, 7
    %v500 = vadd.s32 %v499, 8
    %v501 = vld [vmem:[%s1] sm:$0x1]
    %v502 = vlaneseq
    %v503 = vshrl.u32 %v502, 7
    %v504 = vsub.s32 0, %v503
    %v505 = vrot.slane %v501, %v504
    %vm506 = vcmp.eq.s32.totalorder %v499, %v505
    %vm507 = vcmp.eq.s32.totalorder %v500, %v505
    %v508 = vsel %vm506, 1, 0
    %v509 = vsel %vm507, 1, 0
    %v510 = vcvt.s32.f32 %v508
    %v511 = vcvt.s32.f32 %v509
    %v512 = vld [vmem:[%s3] sm:$0xf]
    %vm513 = vcmask 130048
    %v515 = vsel %vm513, %v512, 0
    %517 = vmatprep.subr.mxu0 0.0
    %518 = vmatpush1.msra.mxu0 0.0
    %519 = vmatprep.subr.mxu0 0.0
    %520 = vmatpush1.msra.mxu0 0.0
    %521 = vmatprep.subr.mxu0 0.0
    %522 = vmatpush1.msra.mxu0 0.0
    %523 = vmatprep.subr.mxu0 0.0
    %524 = vmatpush1.msra.mxu0 0.0
    %525 = vmatprep.subr.mxu0 0.0
    %526 = vmatpush1.msra.mxu0 0.0
    %527 = vmatprep.subr.mxu0 0.0
    %528 = vmatpush1.msra.mxu0 0.0
    %529 = vmatprep.subr.mxu0 0.0
    %530 = vmatpush1.msra.mxu0 0.0
    %531 = vmatprep.subr.mxu0 0.0
    %532 = vmatpush1.msra.mxu0 0.0
    %533 = vmatprep.subr.mxu0 0.0
    %534 = vmatpush1.msra.mxu0 0.0
    %535 = vmatprep.subr.mxu0 0.0
    %536 = vmatpush1.msra.mxu0 0.0
    %537 = vmatprep.subr.mxu0 0.0
    %538 = vmatpush1.msra.mxu0 0.0
    %539 = vmatprep.subr.mxu0 0.0
    %540 = vmatpush1.msra.mxu0 0.0
    %541 = vmatprep.subr.mxu0 0.0
    %542 = vmatpush1.msra.mxu0 0.0
    %543 = vmatprep.subr.mxu0 0.0
    %544 = vmatpush1.msra.mxu0 0.0
    %545 = vmatprep.subr.mxu0 0.0
    %546 = vmatpush1.msra.mxu0 %v511
    %547 = vmatprep.subr.mxu0 0.0
    %548 = vmatpush1.msra.mxu0 %v510
    %549 = vmatprep.subr.mxu0 0.0
    %550 = vmatpush2.msra.mxu0 0.0
    %551 = vmatprep.subr.mxu0 0.0
    %552 = vmatpush2.msra.mxu0 0.0
    %553 = vmatprep.subr.mxu0 0.0
    %554 = vmatpush2.msra.mxu0 0.0
    %555 = vmatprep.subr.mxu0 0.0
    %556 = vmatpush2.msra.mxu0 0.0
    %557 = vmatprep.subr.mxu0 0.0
    %558 = vmatpush2.msra.mxu0 0.0
    %559 = vmatprep.subr.mxu0 0.0
    %560 = vmatpush2.msra.mxu0 0.0
    %561 = vmatprep.subr.mxu0 0.0
    %562 = vmatpush2.msra.mxu0 0.0
    %563 = vmatprep.subr.mxu0 0.0
    %564 = vmatpush2.msra.mxu0 0.0
    %565 = vmatprep.subr.mxu0 0.0
    %566 = vmatpush2.msra.mxu0 0.0
    %567 = vmatprep.subr.mxu0 0.0
    %568 = vmatpush2.msra.mxu0 0.0
    %569 = vmatprep.subr.mxu0 0.0
    %570 = vmatpush2.msra.mxu0 0.0
    %571 = vmatprep.subr.mxu0 0.0
    %572 = vmatpush2.msra.mxu0 0.0
    %573 = vmatprep.subr.mxu0 0.0
    %574 = vmatpush2.msra.mxu0 0.0
    %575 = vmatprep.subr.mxu0 0.0
    %576 = vmatpush2.msra.mxu0 0.0
    %577 = vmatprep.subr.mxu0 0.0
    %578 = vmatpush2.msra.mxu0 0.0
    %579 = vmatprep.subr.mxu0 0.0
    %580 = vmatpush2.msra.mxu0 0.0
    %581 = vmatprep.mubr.f32.mxu0 0.0
    %582 = vmatmul.mubr.f32.gmra.mxu0 %v515
    %v583 = vpop.f32.mrf.mxu0
    %v584 = vadd.f32 0.0, %v583
    %v585 = vpop.f32.mrf.mxu0
    %586 = vdwg.mxu0
    %v587 = vlaneseq
    %v588 = vshrl.u32 %v587, 7
    %v589 = vsub.s32 0, %v588
    %v590 = vrot.slane %v584, %v589
    %v591 = vmul.f32 %v590, %v494
    %v592 = vmul.f32 %v590, %v495
    %v593 = vmul.f32 %v590, %v496
    %v594 = vmul.f32 %v590, %v497
    %v595 = vlaneseq
    %v596 = vshrl.u32 %v595, 7
    %v597 = vsub.s32 1, %v596
    %v598 = vrot.slane %v584, %v597
    %v599 = vmul.f32 %v598, %v494
    %v600 = vmul.f32 %v598, %v495
    %v601 = vmul.f32 %v598, %v496
    %v602 = vmul.f32 %v598, %v497
    %v603 = vlaneseq
    %v604 = vshrl.u32 %v603, 7
    %v605 = vsub.s32 2, %v604
    %v606 = vrot.slane %v584, %v605
    %v607 = vmul.f32 %v606, %v494
    %v608 = vmul.f32 %v606, %v495
    %v609 = vmul.f32 %v606, %v496
    %v610 = vmul.f32 %v606, %v497
    %v611 = vlaneseq
    %v612 = vshrl.u32 %v611, 7
    %v613 = vsub.s32 3, %v612
    %v614 = vrot.slane %v584, %v613
    %v615 = vmul.f32 %v614, %v494
    %v616 = vmul.f32 %v614, %v495
    %v617 = vmul.f32 %v614, %v496
    %v618 = vmul.f32 %v614, %v497
    %v619 = vld [vmem:[%s11] sm:$0xf]
    %v620 = vld [vmem:[%s12] sm:$0xf]
    %vm621 = vcmask 31744
    %v623 = vsel %vm621, %v620, 0
    %vm625 = vcmask 1043456
    %v627 = vsel %vm625, %v584, 0
    %629 = vmatprep.subr.mxu0 0.0
    %630 = vmatpush1.msra.mxu0 0.0
    %631 = vmatprep.subr.mxu0 0.0
    %632 = vmatpush1.msra.mxu0 0.0
    %633 = vmatprep.subr.mxu0 0.0
    %634 = vmatpush1.msra.mxu0 0.0
    %635 = vmatprep.subr.mxu0 0.0
    %636 = vmatpush1.msra.mxu0 0.0
    %637 = vmatprep.subr.mxu0 0.0
    %638 = vmatpush1.msra.mxu0 0.0
    %639 = vmatprep.subr.mxu0 0.0
    %640 = vmatpush1.msra.mxu0 0.0
    %641 = vmatprep.subr.mxu0 0.0
    %642 = vmatpush1.msra.mxu0 0.0
    %643 = vmatprep.subr.mxu0 0.0
    %644 = vmatpush1.msra.mxu0 0.0
    %645 = vmatprep.subr.mxu0 0.0
    %646 = vmatpush1.msra.mxu0 0.0
    %647 = vmatprep.subr.mxu0 0.0
    %648 = vmatpush1.msra.mxu0 0.0
    %649 = vmatprep.subr.mxu0 0.0
    %650 = vmatpush1.msra.mxu0 0.0
    %651 = vmatprep.subr.mxu0 0.0
    %652 = vmatpush1.msra.mxu0 0.0
    %653 = vmatprep.subr.mxu0 0.0
    %654 = vmatpush1.msra.mxu0 0.0
    %655 = vmatprep.subr.mxu0 0.0
    %656 = vmatpush1.msra.mxu0 0.0
    %657 = vmatprep.subr.mxu0 0.0
    %658 = vmatpush1.msra.mxu0 0.0
    %659 = vmatprep.subr.mxu0 0.0
    %660 = vmatpush1.msra.mxu0 %v627
    %661 = vmatprep.subr.mxu0 0.0
    %662 = vmatpush2.msra.mxu0 0.0
    %663 = vmatprep.subr.mxu0 0.0
    %664 = vmatpush2.msra.mxu0 0.0
    %665 = vmatprep.subr.mxu0 0.0
    %666 = vmatpush2.msra.mxu0 0.0
    %667 = vmatprep.subr.mxu0 0.0
    %668 = vmatpush2.msra.mxu0 0.0
    %669 = vmatprep.subr.mxu0 0.0
    %670 = vmatpush2.msra.mxu0 0.0
    %671 = vmatprep.subr.mxu0 0.0
    %672 = vmatpush2.msra.mxu0 0.0
    %673 = vmatprep.subr.mxu0 0.0
    %674 = vmatpush2.msra.mxu0 0.0
    %675 = vmatprep.subr.mxu0 0.0
    %676 = vmatpush2.msra.mxu0 0.0
    %677 = vmatprep.subr.mxu0 0.0
    %678 = vmatpush2.msra.mxu0 0.0
    %679 = vmatprep.subr.mxu0 0.0
    %680 = vmatpush2.msra.mxu0 0.0
    %681 = vmatprep.subr.mxu0 0.0
    %682 = vmatpush2.msra.mxu0 0.0
    %683 = vmatprep.subr.mxu0 0.0
    %684 = vmatpush2.msra.mxu0 0.0
    %685 = vmatprep.subr.mxu0 0.0
    %686 = vmatpush2.msra.mxu0 0.0
    %687 = vmatprep.subr.mxu0 0.0
    %688 = vmatpush2.msra.mxu0 0.0
    %689 = vmatprep.subr.mxu0 0.0
    %690 = vmatpush2.msra.mxu0 0.0
    %691 = vmatprep.subr.mxu0 0.0
    %692 = vmatpush2.msra.mxu0 0.0
    %693 = vmatprep.mubr.f32.mxu0 0.0
    %694 = vmatmul.mubr.f32.gmra.mxu0 %v623
    %v695 = vpop.f32.mrf.mxu0
    %v696 = vadd.f32 0.0, %v695
    %v697 = vpop.f32.mrf.mxu0
    %698 = vdwg.mxu0
    %699 = vmatprep.subr.mxu0 0.0
    %700 = vmatpush1.msra.mxu0 %v618
    %701 = vmatprep.subr.mxu0 0.0
    %702 = vmatpush1.msra.mxu0 %v617
    %703 = vmatprep.subr.mxu0 0.0
    %704 = vmatpush1.msra.mxu0 %v616
    %705 = vmatprep.subr.mxu0 0.0
    %706 = vmatpush1.msra.mxu0 %v615
    %707 = vmatprep.subr.mxu0 0.0
    %708 = vmatpush1.msra.mxu0 %v610
    %709 = vmatprep.subr.mxu0 0.0
    %710 = vmatpush1.msra.mxu0 %v609
    %711 = vmatprep.subr.mxu0 0.0
    %712 = vmatpush1.msra.mxu0 %v608
    %713 = vmatprep.subr.mxu0 0.0
    %714 = vmatpush1.msra.mxu0 %v607
    %715 = vmatprep.subr.mxu0 0.0
    %716 = vmatpush1.msra.mxu0 %v602
    %717 = vmatprep.subr.mxu0 0.0
    %718 = vmatpush1.msra.mxu0 %v601
    %719 = vmatprep.subr.mxu0 0.0
    %720 = vmatpush1.msra.mxu0 %v600
    %721 = vmatprep.subr.mxu0 0.0
    %722 = vmatpush1.msra.mxu0 %v599
    %723 = vmatprep.subr.mxu0 0.0
    %724 = vmatpush1.msra.mxu0 %v594
    %725 = vmatprep.subr.mxu0 0.0
    %726 = vmatpush1.msra.mxu0 %v593
    %727 = vmatprep.subr.mxu0 0.0
    %728 = vmatpush1.msra.mxu0 %v592
    %729 = vmatprep.subr.mxu0 0.0
    %730 = vmatpush1.msra.mxu0 %v591
    %731 = vmatprep.subr.mxu0 0.0
    %732 = vmatpush2.msra.mxu0 0.0
    %733 = vmatprep.subr.mxu0 0.0
    %734 = vmatpush2.msra.mxu0 0.0
    %735 = vmatprep.subr.mxu0 0.0
    %736 = vmatpush2.msra.mxu0 0.0
    %737 = vmatprep.subr.mxu0 0.0
    %738 = vmatpush2.msra.mxu0 0.0
    %739 = vmatprep.subr.mxu0 0.0
    %740 = vmatpush2.msra.mxu0 0.0
    %741 = vmatprep.subr.mxu0 0.0
    %742 = vmatpush2.msra.mxu0 0.0
    %743 = vmatprep.subr.mxu0 0.0
    %744 = vmatpush2.msra.mxu0 0.0
    %745 = vmatprep.subr.mxu0 0.0
    %746 = vmatpush2.msra.mxu0 0.0
    %747 = vmatprep.subr.mxu0 0.0
    %748 = vmatpush2.msra.mxu0 0.0
    %749 = vmatprep.subr.mxu0 0.0
    %750 = vmatpush2.msra.mxu0 0.0
    %751 = vmatprep.subr.mxu0 0.0
    %752 = vmatpush2.msra.mxu0 0.0
    %753 = vmatprep.subr.mxu0 0.0
    %754 = vmatpush2.msra.mxu0 0.0
    %755 = vmatprep.subr.mxu0 0.0
    %756 = vmatpush2.msra.mxu0 0.0
    %757 = vmatprep.subr.mxu0 0.0
    %758 = vmatpush2.msra.mxu0 0.0
    %759 = vmatprep.subr.mxu0 0.0
    %760 = vmatpush2.msra.mxu0 0.0
    %761 = vmatprep.subr.mxu0 0.0
    %762 = vmatpush2.msra.mxu0 0.0
    %763 = vmatprep.mubr.f32.mxu0 0.0
    %764 = vmatmul.mubr.f32.gmra.mxu0 %v619
    %v765 = vpop.f32.mrf.mxu0
    %v766 = vadd.f32 %v696, %v765
    %v767 = vpop.f32.mrf.mxu0
    %768 = vdwg.mxu0
    %v769 = vlaneseq
    %v770 = vand.u32 %v769, 127
    %v771 = vld [vmem:[%s2] sm:$0xff]
    %v772 = vld [vmem:[%s2 + $0x8] sm:$0xff]
    %v773 = vld [vmem:[%s2 + $0x10] sm:$0xff]
    %v774 = vld [vmem:[%s2 + $0x18] sm:$0xff]
    %v775 = vld [vmem:[%s2 + $0x20] sm:$0xff]
    %v776 = vld [vmem:[%s2 + $0x28] sm:$0xff]
    %v777 = vld [vmem:[%s2 + $0x30] sm:$0xff]
    %v778 = vld [vmem:[%s2 + $0x38] sm:$0xff]
    %v779 = vld [vmem:[%s2 + $0x40] sm:$0xff]
    %v780 = vld [vmem:[%s2 + $0x48] sm:$0xff]
    %v781 = vld [vmem:[%s2 + $0x50] sm:$0xff]
    %v782 = vld [vmem:[%s2 + $0x58] sm:$0xff]
    %v783 = vld [vmem:[%s2 + $0x60] sm:$0xff]
    %v784 = vld [vmem:[%s2 + $0x68] sm:$0xff]
    %v785 = vld [vmem:[%s2 + $0x70] sm:$0xff]
    %v786 = vld [vmem:[%s2 + $0x78] sm:$0xff]
    %787 = vset.pattern.permute.xlu0 0
    %788 = vperm.xlu0 %787, %v771
    %v789 = vpop.permute.xlu0 %788
    %790 = vset.pattern.permute.xlu0 0
    %791 = vperm.xlu0 %790, %v772
    %v792 = vpop.permute.xlu0 %791
    %793 = vset.pattern.permute.xlu0 0
    %794 = vperm.xlu0 %793, %v773
    %v795 = vpop.permute.xlu0 %794
    %796 = vset.pattern.permute.xlu0 0
    %797 = vperm.xlu0 %796, %v774
    %v798 = vpop.permute.xlu0 %797
    %799 = vset.pattern.permute.xlu0 0
    %800 = vperm.xlu0 %799, %v775
    %v801 = vpop.permute.xlu0 %800
    %802 = vset.pattern.permute.xlu0 0
    %803 = vperm.xlu0 %802, %v776
    %v804 = vpop.permute.xlu0 %803
    %805 = vset.pattern.permute.xlu0 0
    %806 = vperm.xlu0 %805, %v777
    %v807 = vpop.permute.xlu0 %806
    %808 = vset.pattern.permute.xlu0 0
    %809 = vperm.xlu0 %808, %v778
    %v810 = vpop.permute.xlu0 %809
    %811 = vset.pattern.permute.xlu0 0
    %812 = vperm.xlu0 %811, %v779
    %v813 = vpop.permute.xlu0 %812
    %814 = vset.pattern.permute.xlu0 0
    %815 = vperm.xlu0 %814, %v780
    %v816 = vpop.permute.xlu0 %815
    %817 = vset.pattern.permute.xlu0 0
    %818 = vperm.xlu0 %817, %v781
    %v819 = vpop.permute.xlu0 %818
    %820 = vset.pattern.permute.xlu0 0
    %821 = vperm.xlu0 %820, %v782
    %v822 = vpop.permute.xlu0 %821
    %823 = vset.pattern.permute.xlu0 0
    %824 = vperm.xlu0 %823, %v783
    %v825 = vpop.permute.xlu0 %824
    %826 = vset.pattern.permute.xlu0 0
    %827 = vperm.xlu0 %826, %v784
    %v828 = vpop.permute.xlu0 %827
    %829 = vset.pattern.permute.xlu0 0
    %830 = vperm.xlu0 %829, %v785
    %v831 = vpop.permute.xlu0 %830
    %832 = vset.pattern.permute.xlu0 0
    %833 = vperm.xlu0 %832, %v786
    %v834 = vpop.permute.xlu0 %833
    %vm835 = vcmp.eq.s32.totalorder %v770, %v789
    %vm836 = vcmp.eq.s32.totalorder %v770, %v792
    %vm837 = vcmp.eq.s32.totalorder %v770, %v795
    %vm838 = vcmp.eq.s32.totalorder %v770, %v798
    %vm839 = vcmp.eq.s32.totalorder %v770, %v801
    %vm840 = vcmp.eq.s32.totalorder %v770, %v804
    %vm841 = vcmp.eq.s32.totalorder %v770, %v807
    %vm842 = vcmp.eq.s32.totalorder %v770, %v810
    %vm843 = vcmp.eq.s32.totalorder %v770, %v813
    %vm844 = vcmp.eq.s32.totalorder %v770, %v816
    %vm845 = vcmp.eq.s32.totalorder %v770, %v819
    %vm846 = vcmp.eq.s32.totalorder %v770, %v822
    %vm847 = vcmp.eq.s32.totalorder %v770, %v825
    %vm848 = vcmp.eq.s32.totalorder %v770, %v828
    %vm849 = vcmp.eq.s32.totalorder %v770, %v831
    %vm850 = vcmp.eq.s32.totalorder %v770, %v834
    %v851 = vsel %vm835, 1, 0
    %v852 = vsel %vm836, 1, 0
    %v853 = vsel %vm837, 1, 0
    %v854 = vsel %vm838, 1, 0
    %v855 = vsel %vm839, 1, 0
    %v856 = vsel %vm840, 1, 0
    %v857 = vsel %vm841, 1, 0
    %v858 = vsel %vm842, 1, 0
    %v859 = vsel %vm843, 1, 0
    %v860 = vsel %vm844, 1, 0
    %v861 = vsel %vm845, 1, 0
    %v862 = vsel %vm846, 1, 0
    %v863 = vsel %vm847, 1, 0
    %v864 = vsel %vm848, 1, 0
    %v865 = vsel %vm849, 1, 0
    %v866 = vsel %vm850, 1, 0
    %v867 = vcvt.s32.f32 %v851
    %v868 = vcvt.s32.f32 %v852
    %v869 = vcvt.s32.f32 %v853
    %v870 = vcvt.s32.f32 %v854
    %v871 = vcvt.s32.f32 %v855
    %v872 = vcvt.s32.f32 %v856
    %v873 = vcvt.s32.f32 %v857
    %v874 = vcvt.s32.f32 %v858
    %v875 = vcvt.s32.f32 %v859
    %v876 = vcvt.s32.f32 %v860
    %v877 = vcvt.s32.f32 %v861
    %v878 = vcvt.s32.f32 %v862
    %v879 = vcvt.s32.f32 %v863
    %v880 = vcvt.s32.f32 %v864
    %v881 = vcvt.s32.f32 %v865
    %v882 = vcvt.s32.f32 %v866
    %v883 = vld [vmem:[#allocation5] sm:$0xf]
    %884 = vmatprep.subr.mxu0 0.0
    %885 = vmatpush1.msra.mxu0 %v882
    %886 = vmatprep.subr.mxu0 0.0
    %887 = vmatpush1.msra.mxu0 %v881
    %888 = vmatprep.subr.mxu0 0.0
    %889 = vmatpush1.msra.mxu0 %v880
    %890 = vmatprep.subr.mxu0 0.0
    %891 = vmatpush1.msra.mxu0 %v879
    %892 = vmatprep.subr.mxu0 0.0
    %893 = vmatpush1.msra.mxu0 %v878
    %894 = vmatprep.subr.mxu0 0.0
    %895 = vmatpush1.msra.mxu0 %v877
    %896 = vmatprep.subr.mxu0 0.0
    %897 = vmatpush1.msra.mxu0 %v876
    %898 = vmatprep.subr.mxu0 0.0
    %899 = vmatpush1.msra.mxu0 %v875
    %900 = vmatprep.subr.mxu0 0.0
    %901 = vmatpush1.msra.mxu0 %v874
    %902 = vmatprep.subr.mxu0 0.0
    %903 = vmatpush1.msra.mxu0 %v873
    %904 = vmatprep.subr.mxu0 0.0
    %905 = vmatpush1.msra.mxu0 %v872
    %906 = vmatprep.subr.mxu0 0.0
    %907 = vmatpush1.msra.mxu0 %v871
    %908 = vmatprep.subr.mxu0 0.0
    %909 = vmatpush1.msra.mxu0 %v870
    %910 = vmatprep.subr.mxu0 0.0
    %911 = vmatpush1.msra.mxu0 %v869
    %912 = vmatprep.subr.mxu0 0.0
    %913 = vmatpush1.msra.mxu0 %v868
    %914 = vmatprep.subr.mxu0 0.0
    %915 = vmatpush1.msra.mxu0 %v867
    %916 = vmatprep.subr.mxu0 0.0
    %917 = vmatpush2.msra.mxu0 0.0
    %918 = vmatprep.subr.mxu0 0.0
    %919 = vmatpush2.msra.mxu0 0.0
    %920 = vmatprep.subr.mxu0 0.0
    %921 = vmatpush2.msra.mxu0 0.0
    %922 = vmatprep.subr.mxu0 0.0
    %923 = vmatpush2.msra.mxu0 0.0
    %924 = vmatprep.subr.mxu0 0.0
    %925 = vmatpush2.msra.mxu0 0.0
    %926 = vmatprep.subr.mxu0 0.0
    %927 = vmatpush2.msra.mxu0 0.0
    %928 = vmatprep.subr.mxu0 0.0
    %929 = vmatpush2.msra.mxu0 0.0
    %930 = vmatprep.subr.mxu0 0.0
    %931 = vmatpush2.msra.mxu0 0.0
    %932 = vmatprep.subr.mxu0 0.0
    %933 = vmatpush2.msra.mxu0 0.0
    %934 = vmatprep.subr.mxu0 0.0
    %935 = vmatpush2.msra.mxu0 0.0
    %936 = vmatprep.subr.mxu0 0.0
    %937 = vmatpush2.msra.mxu0 0.0
    %938 = vmatprep.subr.mxu0 0.0
    %939 = vmatpush2.msra.mxu0 0.0
    %940 = vmatprep.subr.mxu0 0.0
    %941 = vmatpush2.msra.mxu0 0.0
    %942 = vmatprep.subr.mxu0 0.0
    %943 = vmatpush2.msra.mxu0 0.0
    %944 = vmatprep.subr.mxu0 0.0
    %945 = vmatpush2.msra.mxu0 0.0
    %946 = vmatprep.subr.mxu0 0.0
    %947 = vmatpush2.msra.mxu0 0.0
    %948 = vmatprep.mubr.f32.mxu0 0.0
    %949 = vmatmul.mubr.f32.gmra.mxu0 %v766
    %v950 = vpop.f32.mrf.mxu0
    %v951 = vadd.f32 0.0, %v950
    %v952 = vpop.f32.mrf.mxu0
    %953 = vdwg.mxu0
    %v954 = vadd.f32 %v883, %v951
    %vm955 = vcmask 125952
    %956 = vst.msk [vmem:[#allocation5] sm:$0xf] %vm955, %v954
    // Predicated region
    $region74: #{tpu_custom_call.1} parent=1 // pred_check
      %p957 = pneg %p67
    $region75: #{tpu_custom_call.1} parent=1 // pred_check_branch
      %959 = sbr.rel (%p957) target = $region77
    $region76: #{tpu_custom_call.1} parent=1 // pred_region
      %v960 = vld [vmem:[#allocation5] sm:$0xf]
      %v961 = vld [vmem:[%s4] sm:$0x1]
      %v963 = vlaneseq
      %v964 = vshrl.u32 %v963, 7
      %v965 = vsub.s32 0, %v964
      %v966 = vrot.slane %v961, %v965
      %v968 = vmul.f32 %v960, %v966
      %v969 = vld [vmem:[%s13] sm:$0xf]
      %v970 = vld [vmem:[%s3] sm:$0xf]
      %v972 = vsel %vm621, %v969, 0
      %v975 = vsel %vm625, %v970, 0
      %977 = vmatprep.subr.mxu0 0.0
      %978 = vmatpush1.msra.mxu0 0.0
      %979 = vmatprep.subr.mxu0 0.0
      %980 = vmatpush1.msra.mxu0 0.0
      %981 = vmatprep.subr.mxu0 0.0
      %982 = vmatpush1.msra.mxu0 0.0
      %983 = vmatprep.subr.mxu0 0.0
      %984 = vmatpush1.msra.mxu0 0.0
      %985 = vmatprep.subr.mxu0 0.0
      %986 = vmatpush1.msra.mxu0 0.0
      %987 = vmatprep.subr.mxu0 0.0
      %988 = vmatpush1.msra.mxu0 0.0
      %989 = vmatprep.subr.mxu0 0.0
      %990 = vmatpush1.msra.mxu0 0.0
      %991 = vmatprep.subr.mxu0 0.0
      %992 = vmatpush1.msra.mxu0 0.0
      %993 = vmatprep.subr.mxu0 0.0
      %994 = vmatpush1.msra.mxu0 0.0
      %995 = vmatprep.subr.mxu0 0.0
      %996 = vmatpush1.msra.mxu0 0.0
      %997 = vmatprep.subr.mxu0 0.0
      %998 = vmatpush1.msra.mxu0 0.0
      %999 = vmatprep.subr.mxu0 0.0
      %1000 = vmatpush1.msra.mxu0 0.0
      %1001 = vmatprep.subr.mxu0 0.0
      %1002 = vmatpush1.msra.mxu0 0.0
      %1003 = vmatprep.subr.mxu0 0.0
      %1004 = vmatpush1.msra.mxu0 0.0
      %1005 = vmatprep.subr.mxu0 0.0
      %1006 = vmatpush1.msra.mxu0 0.0
      %1007 = vmatprep.subr.mxu0 0.0
      %1008 = vmatpush1.msra.mxu0 %v975
      %1009 = vmatprep.subr.mxu0 0.0
      %1010 = vmatpush2.msra.mxu0 0.0
      %1011 = vmatprep.subr.mxu0 0.0
      %1012 = vmatpush2.msra.mxu0 0.0
      %1013 = vmatprep.subr.mxu0 0.0
      %1014 = vmatpush2.msra.mxu0 0.0
      %1015 = vmatprep.subr.mxu0 0.0
      %1016 = vmatpush2.msra.mxu0 0.0
      %1017 = vmatprep.subr.mxu0 0.0
      %1018 = vmatpush2.msra.mxu0 0.0
      %1019 = vmatprep.subr.mxu0 0.0
      %1020 = vmatpush2.msra.mxu0 0.0
      %1021 = vmatprep.subr.mxu0 0.0
      %1022 = vmatpush2.msra.mxu0 0.0
      %1023 = vmatprep.subr.mxu0 0.0
      %1024 = vmatpush2.msra.mxu0 0.0
      %1025 = vmatprep.subr.mxu0 0.0
      %1026 = vmatpush2.msra.mxu0 0.0
      %1027 = vmatprep.subr.mxu0 0.0
      %1028 = vmatpush2.msra.mxu0 0.0
      %1029 = vmatprep.subr.mxu0 0.0
      %1030 = vmatpush2.msra.mxu0 0.0
      %1031 = vmatprep.subr.mxu0 0.0
      %1032 = vmatpush2.msra.mxu0 0.0
      %1033 = vmatprep.subr.mxu0 0.0
      %1034 = vmatpush2.msra.mxu0 0.0
      %1035 = vmatprep.subr.mxu0 0.0
      %1036 = vmatpush2.msra.mxu0 0.0
      %1037 = vmatprep.subr.mxu0 0.0
      %1038 = vmatpush2.msra.mxu0 0.0
      %1039 = vmatprep.subr.mxu0 0.0
      %1040 = vmatpush2.msra.mxu0 0.0
      %1041 = vmatprep.mubr.f32.mxu0 0.0
      %1042 = vmatmul.mubr.f32.gmra.mxu0 %v972
      %v1043 = vpop.f32.mrf.mxu0
      %v1044 = vadd.f32 0.0, %v1043
      %v1045 = vpop.f32.mrf.mxu0
      %1046 = vdwg.mxu0
      %v1047 = vadd.f32 %v968, %v1044
      %v1048 = vld [vmem:[%s14] sm:$0xf]
      %1050 = vset.pattern.permute.xlu0 0
      %1051 = vperm.xlu0 %1050, %v1048
      %v1052 = vpop.permute.xlu0 %1051
      %v1054 = vadd.f32 %v1047, %v1052
      %vm1055 = vcmp.ge.f32.partialorder %v1054, 0.0
      %v1056 = vstv %s76
      %v1057 = vmul.f32 %v1056, %v1054
      %v1058 = vsel %vm1055, %v1054, %v1057
      %1059 = vst.msk [vmem:[#allocation5] sm:$0xf] %vm955, %v1058
    $region77: #{tpu_custom_call.1} parent=1 // pred_fallthru
      _
    // Predicated region
    $region78: #{tpu_custom_call.1} parent=1 // pred_check
      _
    $region79: #{tpu_custom_call.1} parent=1 // pred_check_branch
      %1061 = sbr.rel (0) target = $region81
    $region80: #{tpu_custom_call.1} parent=1 // pred_region
      %s1063 = ssub.s32 64, 64
      %1064 = vsyncadd [#allocation3], %s1063
      %s1066 = sshll.u32 [#allocation5], 4
      %s1067 = int_to_ptr.vmem [resolvable:$true] %s1066
      %1069 = dma.vmem_to_hbm [thread:$0]  %s1067, 64, %s16, [#allocation3]
    $region81: #{tpu_custom_call.1} parent=1 // pred_fallthru
      _
    // Predicated region
    $region82: #{tpu_custom_call.1} parent=1 // pred_check
      _
    $region83: #{tpu_custom_call.1} parent=1 // pred_check_branch
      %1071 = sbr.rel (0) target = $region85
    $region84: #{tpu_custom_call.1} parent=1 // pred_region
      %1072 = dma.done [#allocation3], 64
    $region85: #{tpu_custom_call.1} parent=1 // pred_fallthru
      _
    %1073 = vsyncpa [#allocation3], 1
    %1074 = vsyncpa [#allocation4], 1

</llo_original>
